<compile_context>
chip_gen: v5e
topology: v5e:2x2
jax: 0.10.0
libtpu: 0.0.40
codegen_flags: <defaults>
</compile_context>

<pallas_src>
import jax
import jax.numpy as jnp
from jax.experimental import pallas as pl
from jax.experimental.pallas import tpu as pltpu

HIDDEN = 256
BN_EPS = 1e-5
_H_CACHE_BUDGET_BYTES = 16 * 1024 * 1024  # bf16 h-cache cap; safe on v5e/v6e/v7x VMEM


def _round_up(x, m):
    return ((x + m - 1) // m) * m


def _make_kernel(n_valid, n_pad, block_rows, use_h_cache):
    inv_n = 1.0 / float(n_valid)
    pad_rows = float(n_pad - n_valid)
    needs_mask = n_pad != n_valid

    def kernel(x_ref, w1_ref, b1_ref, gamma_ref, beta_ref, w2_ref, b2_ref, t_ref,
               out_ref, loss_ref,
               sum_ref, sumsq_ref, w2eff_ref, b2eff_ref, sse_ref, *maybe_hcache):
        phase = pl.program_id(0)
        tile = pl.program_id(1)
        n_tiles = pl.num_programs(1)
        h_cache = maybe_hcache[0] if use_h_cache else None

        def hidden():
            # bf16 MXU matmul with f32 accumulation, bias + ReLU in f32.
            h = jnp.dot(x_ref[...], w1_ref[...], preferred_element_type=jnp.float32)
            return jnp.maximum(h + b1_ref[...], 0.0)          # (block_rows, 256) f32

        # ---------------- phase 0: batch statistics -> fused (w2 * BN) --------------
        @pl.when(phase == 0)
        def _():
            @pl.when(tile == 0)
            def _():
                sum_ref[...] = jnp.zeros_like(sum_ref)
                sumsq_ref[...] = jnp.zeros_like(sumsq_ref)
                # Defensive: parked output/loss windows are overwritten in phase 1
                # before their only writeback, but keep their content deterministic.
                out_ref[...] = jnp.zeros_like(out_ref)
                loss_ref[...] = jnp.zeros_like(loss_ref)

            h = hidden()

            # Unmasked accumulation over all n_pad rows: every padded row is exactly
            # ReLU(b1), corrected once in the finalize (saves iota/cmp/select vreg
            # work in this VALU-bound loop).
            sum_ref[...] += jnp.sum(h, axis=0, keepdims=True)
            sumsq_ref[...] += jnp.sum(h * h, axis=0, keepdims=True)

            if use_h_cache:
                row0 = pl.multiple_of(tile * block_rows, block_rows)
                h_cache[pl.ds(row0, block_rows), :] = h.astype(h_cache.dtype)

            @pl.when(tile == n_tiles - 1)
            def _():
                s = sum_ref[...]
                sq = sumsq_ref[...]
                if needs_mask:
                    h_pad = jnp.maximum(b1_ref[...], 0.0)     # hidden value of a zero row
                    s = s - pad_rows * h_pad
                    sq = sq - pad_rows * (h_pad * h_pad)
                mean = s * inv_n
                var = jnp.maximum(sq * inv_n - mean * mean, 0.0)
                scale = gamma_ref[...] * jax.lax.rsqrt(var + BN_EPS)
                shift = beta_ref[...] - mean * scale
                # Fold the BN affine into the final Linear:
                #   pred = w2 . (h*scale + shift) + b2 = (w2*scale) . h + (w2.shift + b2)
                w2eff_ref[...] = w2_ref[...] * scale
                b2eff_ref[...] = (jnp.sum(w2_ref[...] * shift, axis=1, keepdims=True)
                                  + b2_ref[...])

        # ---------------- phase 1: fused Linear(256,1) + MSE ------------------------
        @pl.when(phase == 1)
        def _():
            @pl.when(tile == 0)
            def _():
                sse_ref[...] = jnp.zeros_like(sse_ref)

            # Dropout(0.1): identity (deterministic / eval-mode).
            if use_h_cache:
                row0 = pl.multiple_of(tile * block_rows, block_rows)
                h = h_cache[pl.ds(row0, block_rows), :]        # (block_rows, 256) bf16
                w2e = w2eff_ref[...].astype(h.dtype)
            else:
                h = hidden()                                   # recompute (x re-streamed)
                w2e = w2eff_ref[...]

            # Transposed 256->1 linear so the prediction comes out lane-dense:
            # pred[0, r] = sum_k w2e[0, k] * h[r, k].
            pred = jax.lax.dot_general(
                w2e, h, (((1,), (1,)), ((), ())),
                preferred_element_type=jnp.float32) + b2eff_ref[...]   # (1, block_rows)
            out_ref[...] = pred.astype(out_ref.dtype)

            diff = pred - t_ref[...]
            if needs_mask:
                lanes = tile * block_rows + jax.lax.broadcasted_iota(
                    jnp.int32, (1, block_rows), 1)
                diff = jnp.where(lanes < n_valid, diff, 0.0)
            # Lane-wise SSE accumulation; single cross-lane reduce in the finalize.
            sse_ref[...] += diff * diff

            @pl.when(tile == n_tiles - 1)
            def _():
                loss_ref[...] = jnp.sum(sse_ref[...], axis=1, keepdims=True) * inv_n

    return kernel


def confidence_regression_forward(seq_input, targets, params, *, block_rows=1024,
                                  use_h_cache=None):
    """Full forward pass (loss, output) in one tiled Pallas kernel.

    seq_input: (N, D) float32
    targets:   (N, 1) float32
    params: w1 (D,256) [= torch weight.T], b1 (1,256), gamma/beta (1,256),
            w2 (1,256) [= torch (out,in) weight], b2 (1,1)
    """
    n, d = seq_input.shape
    assert params["w2"].shape == (1, HIDDEN), "kernel is specialised to num_classes == 1"
    assert n >= 2, "BatchNorm1d training-mode statistics need batch >= 2"

    # Tile width must keep the (1, block_rows) output/target blocks lane-dense and
    # satisfy the bf16 sublane minimum -> enforce a multiple of 128.
    block_rows = max(128, _round_up(int(block_rows), 128))
    block_rows = min(block_rows, _round_up(n, 128))
    n_pad = _round_up(n, block_rows)
    n_tiles = n_pad // block_rows
    needs_mask = n_pad != n

    if use_h_cache is None:
        use_h_cache = n_pad * HIDDEN * 2 <= _H_CACHE_BUDGET_BYTES
    use_h_cache = bool(use_h_cache)

    # bf16 inputs for the first matmul (HBM traffic + MXU path); math stays f32.
    x = seq_input.astype(jnp.bfloat16)
    if needs_mask:
        x = jnp.pad(x, ((0, n_pad - n), (0, 0)))
    w1 = params["w1"].astype(jnp.bfloat16)
    b1 = params["b1"].reshape(1, HIDDEN).astype(jnp.float32)
    gamma = params["gamma"].reshape(1, HIDDEN).astype(jnp.float32)
    beta = params["beta"].reshape(1, HIDDEN).astype(jnp.float32)
    w2 = params["w2"].reshape(1, HIDDEN).astype(jnp.float32)
    b2 = params["b2"].reshape(1, 1).astype(jnp.float32)

    # Targets as a lane-dense (1, N_pad) row so per-tile loads are unmasked.
    t_row = targets.reshape(1, n).astype(jnp.float32)
    if needs_mask:
        t_row = jnp.pad(t_row, ((0, 0), (0, n_pad - n)))

    kernel = _make_kernel(n, n_pad, block_rows, use_h_cache)

    if use_h_cache:
        # x is only needed during the stats phase; park its window afterwards.
        x_index_map = lambda p, i: (i * (1 - p) + p * (n_tiles - 1), 0)
    else:
        x_index_map = lambda p, i: (i, 0)

    scratch_shapes = [
        pltpu.VMEM((1, HIDDEN), jnp.float32),        # feature-wise sum
        pltpu.VMEM((1, HIDDEN), jnp.float32),        # feature-wise sum of squares
        pltpu.VMEM((1, HIDDEN), jnp.float32),        # w2 * BN scale
        pltpu.VMEM((1, 1), jnp.float32),             # w2 . BN shift + b2
        pltpu.VMEM((1, block_rows), jnp.float32),    # lane-wise SSE accumulator
    ]
    if use_h_cache:
        scratch_shapes.append(pltpu.VMEM((n_pad, HIDDEN), jnp.bfloat16))  # h cache

    out_row, loss = pl.pallas_call(
        kernel,
        out_shape=(
            jax.ShapeDtypeStruct((1, n_pad), jnp.float32),   # lane-dense predictions
            jax.ShapeDtypeStruct((1, 1), jnp.float32),       # mean loss
        ),
        grid=(2, n_tiles),                                   # (phase, row tile)
        in_specs=[
            pl.BlockSpec((block_rows, d), x_index_map),           # x
            pl.BlockSpec((d, HIDDEN), lambda p, i: (0, 0)),       # w1 (resident)
            pl.BlockSpec((1, HIDDEN), lambda p, i: (0, 0)),       # b1
            pl.BlockSpec((1, HIDDEN), lambda p, i: (0, 0)),       # gamma
            pl.BlockSpec((1, HIDDEN), lambda p, i: (0, 0)),       # beta
            pl.BlockSpec((1, HIDDEN), lambda p, i: (0, 0)),       # w2
            pl.BlockSpec((1, 1), lambda p, i: (0, 0)),            # b2
            # Parked on block 0 during the stats phase (only needed in phase 1).
            pl.BlockSpec((1, block_rows), lambda p, i: (0, i * p)),  # targets row
        ],
        out_specs=(
            # i*p parks the output window on block 0 during phase 0; each block is
            # written exactly once (phase 1) before its single writeback.
            pl.BlockSpec((1, block_rows), lambda p, i: (0, i * p)),
            pl.BlockSpec((1, 1), lambda p, i: (0, 0)),
        ),
        scratch_shapes=scratch_shapes,
        compiler_params=pltpu.CompilerParams(
            # Stats are a cross-tile reduction into shared scratch -> both axes
            # must run sequentially on one core.
            dimension_semantics=("arbitrary", "arbitrary"),
            # Tiles + (<=16 MiB) h-cache stay well under this on v5e/v6e/v7x.
            vmem_limit_bytes=32 * 1024 * 1024,
        ),
    )(x, w1, b1, gamma, beta, w2, b2, t_row)

    out = out_row[0, :n].reshape(n, 1)
    return loss[0, 0], out


def init_params(key, input_dims):
    """PyTorch-default init. Layout: w1 = Linear(D,256).weight.T -> (D,256);
    w2 = Linear(256,1).weight (out,in) -> (1,256); b2 -> (1,1)."""
    k1, k2, k3, k4 = jax.random.split(key, 4)
    bound1 = float(input_dims) ** -0.5
    bound2 = float(HIDDEN) ** -0.5
    return {
        "w1": jax.random.uniform(k1, (input_dims, HIDDEN), jnp.float32, -bound1, bound1),
        "b1": jax.random.uniform(k2, (1, HIDDEN), jnp.float32, -bound1, bound1),
        "gamma": jnp.ones((1, HIDDEN), jnp.float32),
        "beta": jnp.zeros((1, HIDDEN), jnp.float32),
        "w2": jax.random.uniform(k3, (1, HIDDEN), jnp.float32, -bound2, bound2),
        "b2": jax.random.uniform(k4, (1, 1), jnp.float32, -bound2, bound2),
    }


if __name__ == "__main__":
    key = jax.random.PRNGKey(0)
    k_x, k_t, k_p = jax.random.split(key, 3)

    batch = 200          # not a multiple of the tile -> exercises padding correction
    input_dims = 32

    seq_input = jax.random.normal(k_x, (batch, input_dims), jnp.float32)
    targets = jax.random.uniform(k_t, (batch, 1), jnp.float32)
    params = init_params(k_p, input_dims)

    # Pure-JAX reference mirroring the kernel's mixed precision
    # (bf16 first matmul with f32 accumulation, f32 everywhere else).
    h = jnp.dot(seq_input.astype(jnp.bfloat16), params["w1"].astype(jnp.bfloat16),
                preferred_element_type=jnp.float32) + params["b1"]
    h = jnp.maximum(h, 0.0)
    mean = h.mean(0, keepdims=True)
    var = jnp.maximum((h * h).mean(0, keepdims=True) - mean * mean, 0.0)
    y = (h - mean) * jax.lax.rsqrt(var + BN_EPS) * params["gamma"] + params["beta"]
    ref_out = jnp.sum(y * params["w2"], axis=1, keepdims=True) + params["b2"]
    ref_loss = jnp.mean((ref_out - targets) ** 2)

    # Exercise both the h-cache path and the recompute (streaming) path.
    for use_cache in (True, False):
        loss, output = confidence_regression_forward(
            seq_input, targets, params, block_rows=128, use_h_cache=use_cache)
        jax.block_until_ready((loss, output))

        assert output.shape == (batch, 1)
        assert jnp.allclose(output, ref_out, atol=1e-2, rtol=1e-2), \
            (use_cache, float(jnp.max(jnp.abs(output - ref_out))))
        assert jnp.allclose(loss, ref_loss, atol=1e-2, rtol=1e-2), \
            (use_cache, float(loss), float(ref_loss))

    print("KERNEL_OK")
</pallas_src>

<mosaic_0001>
module attributes {stable_mosaic.version = 11 : i64} {
  func.func @kernel(%arg0: i32, %arg1: i32, %arg2: memref<128x32xbf16, #tpu.memory_space<vmem>>, %arg3: memref<32x256xbf16, #tpu.memory_space<vmem>>, %arg4: memref<1x256xf32, #tpu.memory_space<vmem>>, %arg5: memref<1x256xf32, #tpu.memory_space<vmem>>, %arg6: memref<1x256xf32, #tpu.memory_space<vmem>>, %arg7: memref<1x256xf32, #tpu.memory_space<vmem>>, %arg8: memref<1x1xf32, #tpu.memory_space<vmem>>, %arg9: memref<1x128xf32, #tpu.memory_space<vmem>>, %arg10: memref<1x128xf32, #tpu.memory_space<vmem>>, %arg11: memref<1x1xf32, #tpu.memory_space<vmem>>, %arg12: memref<1x256xf32, #tpu.memory_space<vmem>>, %arg13: memref<1x256xf32, #tpu.memory_space<vmem>>, %arg14: memref<1x256xf32, #tpu.memory_space<vmem>>, %arg15: memref<1x1xf32, #tpu.memory_space<vmem>>, %arg16: memref<1x128xf32, #tpu.memory_space<vmem>>, %arg17: memref<256x256xbf16, #tpu.memory_space<vmem>>) attributes {dimension_semantics = [#tpu.dimension_semantics<arbitrary>, #tpu.dimension_semantics<arbitrary>], iteration_bounds = array<i64: 2, 2>, scalar_prefetch = 0 : i64, scratch_operands = 6 : i64, tpu.core_type = #tpu.core_type<tc>, window_params = [{transform_indices = @transform_0, window_bounds = array<i64: 128, 32>}, {pipeline_mode = #tpu.pipeline_mode<synchronous>, transform_indices = @transform_1, window_bounds = array<i64: 32, 256>}, {pipeline_mode = #tpu.pipeline_mode<synchronous>, transform_indices = @transform_2, window_bounds = array<i64: 1, 256>}, {pipeline_mode = #tpu.pipeline_mode<synchronous>, transform_indices = @transform_3, window_bounds = array<i64: 1, 256>}, {pipeline_mode = #tpu.pipeline_mode<synchronous>, transform_indices = @transform_4, window_bounds = array<i64: 1, 256>}, {pipeline_mode = #tpu.pipeline_mode<synchronous>, transform_indices = @transform_5, window_bounds = array<i64: 1, 256>}, {pipeline_mode = #tpu.pipeline_mode<synchronous>, transform_indices = @transform_6, window_bounds = array<i64: 1, 1>}, {transform_indices = @transform_7, window_bounds = array<i64: 1, 128>}, {transform_indices = @transform_8, window_bounds = array<i64: 1, 128>}, {pipeline_mode = #tpu.pipeline_mode<synchronous>, transform_indices = @transform_9, window_bounds = array<i64: 1, 1>}]} {
    %c0_i32 = arith.constant 0 : i32
    %0 = arith.cmpi eq, %arg0, %c0_i32 : i32
    %1 = arith.extui %0 : i1 to i32
    %c0_i32_0 = arith.constant 0 : i32
    %2 = arith.cmpi ne, %1, %c0_i32_0 : i32
    scf.if %2 {
      %c0_i32_2 = arith.constant 0 : i32
      %6 = arith.cmpi eq, %arg1, %c0_i32_2 : i32
      %7 = arith.extui %6 : i1 to i32
      %c0_i32_3 = arith.constant 0 : i32
      %8 = arith.cmpi ne, %7, %c0_i32_3 : i32
      scf.if %8 {
        %cst_23 = arith.constant 0.000000e+00 : f32
        %36 = vector.broadcast %cst_23 : f32 to vector<1x256xf32>
        %c0_24 = arith.constant 0 : index
        %c0_25 = arith.constant 0 : index
        %37 = vector.load %arg12[%c0_24, %c0_25] : memref<1x256xf32, #tpu.memory_space<vmem>>, vector<1x256xf32>
        tpu.vector_store %arg12[%c0_24, %c0_25], %36 {strides = array<i32>} : memref<1x256xf32, #tpu.memory_space<vmem>>, vector<1x256xf32>,
        %cst_26 = arith.constant 0.000000e+00 : f32
        %38 = vector.broadcast %cst_26 : f32 to vector<1x256xf32>
        %c0_27 = arith.constant 0 : index
        %c0_28 = arith.constant 0 : index
        %39 = vector.load %arg13[%c0_27, %c0_28] : memref<1x256xf32, #tpu.memory_space<vmem>>, vector<1x256xf32>
        tpu.vector_store %arg13[%c0_27, %c0_28], %38 {strides = array<i32>} : memref<1x256xf32, #tpu.memory_space<vmem>>, vector<1x256xf32>,
        %cst_29 = arith.constant 0.000000e+00 : f32
        %40 = vector.broadcast %cst_29 : f32 to vector<1x128xf32>
        %c0_30 = arith.constant 0 : index
        %c0_31 = arith.constant 0 : index
        %41 = vector.load %arg10[%c0_30, %c0_31] : memref<1x128xf32, #tpu.memory_space<vmem>>, vector<1x128xf32>
        tpu.vector_store %arg10[%c0_30, %c0_31], %40 {strides = array<i32>} : memref<1x128xf32, #tpu.memory_space<vmem>>, vector<1x128xf32>,
        %cst_32 = arith.constant 0.000000e+00 : f32
        %42 = vector.broadcast %cst_32 : f32 to vector<1x1xf32>
        %c0_33 = arith.constant 0 : index
        %c0_34 = arith.constant 0 : index
        %43 = vector.load %arg11[%c0_33, %c0_34] : memref<1x1xf32, #tpu.memory_space<vmem>>, vector<1x1xf32>
        tpu.vector_store %arg11[%c0_33, %c0_34], %42 {strides = array<i32>} : memref<1x1xf32, #tpu.memory_space<vmem>>, vector<1x1xf32>,
      } else {
      }
      %c0 = arith.constant 0 : index
      %c0_4 = arith.constant 0 : index
      %9 = vector.load %arg2[%c0, %c0_4] : memref<128x32xbf16, #tpu.memory_space<vmem>>, vector<128x32xbf16>
      %c0_5 = arith.constant 0 : index
      %c0_6 = arith.constant 0 : index
      %10 = vector.load %arg3[%c0_5, %c0_6] : memref<32x256xbf16, #tpu.memory_space<vmem>>, vector<32x256xbf16>
      %cst = arith.constant dense<0.000000e+00> : vector<128x256xf32>
      %11 = tpu.matmul %9, %10, %cst {dimension_numbers = #tpu.dot_dimension_numbers<[1], [0], [0], [1], [0, 0, 1, 1], [], []>} : vector<128x32xbf16>, vector<32x256xbf16>, vector<128x256xf32> -> vector<128x256xf32>
      %c0_7 = arith.constant 0 : index
      %c0_8 = arith.constant 0 : index
      %12 = vector.load %arg4[%c0_7, %c0_8] : memref<1x256xf32, #tpu.memory_space<vmem>>, vector<1x256xf32>
      %13 = vector.broadcast %12 : vector<1x256xf32> to vector<128x256xf32>
      %14 = arith.addf %11, %13 : vector<128x256xf32>
      %cst_9 = arith.constant 0.000000e+00 : f32
      %15 = vector.broadcast %cst_9 : f32 to vector<128x256xf32>
      %16 = arith.maximumf %14, %15 : vector<128x256xf32>
      %c0_10 = arith.constant 0 : index
      %c0_11 = arith.constant 0 : index
      %17 = vector.load %arg12[%c0_10, %c0_11] : memref<1x256xf32, #tpu.memory_space<vmem>>, vector<1x256xf32>
      %cst_12 = arith.constant dense<0.000000e+00> : vector<256xf32>
      %18 = vector.multi_reduction <add>, %16, %cst_12 [0] : vector<128x256xf32> to vector<256xf32>
      %19 = vector.shape_cast %18 : vector<256xf32> to vector<1x256xf32>
      %20 = arith.addf %17, %19 : vector<1x256xf32>
      %c0_13 = arith.constant 0 : index
      %c0_14 = arith.constant 0 : index
      %21 = vector.load %arg12[%c0_13, %c0_14] : memref<1x256xf32, #tpu.memory_space<vmem>>, vector<1x256xf32>
      tpu.vector_store %arg12[%c0_13, %c0_14], %20 {strides = array<i32>} : memref<1x256xf32, #tpu.memory_space<vmem>>, vector<1x256xf32>,
      %c0_15 = arith.constant 0 : index
      %c0_16 = arith.constant 0 : index
      %22 = vector.load %arg13[%c0_15, %c0_16] : memref<1x256xf32, #tpu.memory_space<vmem>>, vector<1x256xf32>
      %23 = arith.mulf %16, %16 : vector<128x256xf32>
      %cst_17 = arith.constant dense<0.000000e+00> : vector<256xf32>
      %24 = vector.multi_reduction <add>, %23, %cst_17 [0] : vector<128x256xf32> to vector<256xf32>
      %25 = vector.shape_cast %24 : vector<256xf32> to vector<1x256xf32>
      %26 = arith.addf %22, %25 : vector<1x256xf32>
      %c0_18 = arith.constant 0 : index
      %c0_19 = arith.constant 0 : index
      %27 = vector.load %arg13[%c0_18, %c0_19] : memref<1x256xf32, #tpu.memory_space<vmem>>, vector<1x256xf32>
      tpu.vector_store %arg13[%c0_18, %c0_19], %26 {strides = array<i32>} : memref<1x256xf32, #tpu.memory_space<vmem>>, vector<1x256xf32>,
      %c128_i32 = arith.constant 128 : i32
      %28 = arith.muli %arg1, %c128_i32 : i32
      %29 = tpu.assume_multiple %28, 128 : i32
      %30 = arith.truncf %16 : vector<128x256xf32> to vector<128x256xbf16>
      %31 = arith.index_cast %29 : i32 to index
      %c0_20 = arith.constant 0 : index
      %32 = vector.load %arg17[%31, %c0_20] : memref<256x256xbf16, #tpu.memory_space<vmem>>, vector<128x256xbf16>
      tpu.vector_store %arg17[%31, %c0_20], %30 {strides = array<i32>} : memref<256x256xbf16, #tpu.memory_space<vmem>>, vector<128x256xbf16>,
      %c1_i32_21 = arith.constant 1 : i32
      %33 = arith.cmpi eq, %arg1, %c1_i32_21 : i32
      %34 = arith.extui %33 : i1 to i32
      %c0_i32_22 = arith.constant 0 : i32
      %35 = arith.cmpi ne, %34, %c0_i32_22 : i32
      scf.if %35 {
        %c0_23 = arith.constant 0 : index
        %c0_24 = arith.constant 0 : index
        %36 = vector.load %arg12[%c0_23, %c0_24] : memref<1x256xf32, #tpu.memory_space<vmem>>, vector<1x256xf32>
        %c0_25 = arith.constant 0 : index
        %c0_26 = arith.constant 0 : index
        %37 = vector.load %arg13[%c0_25, %c0_26] : memref<1x256xf32, #tpu.memory_space<vmem>>, vector<1x256xf32>
        %c0_27 = arith.constant 0 : index
        %c0_28 = arith.constant 0 : index
        %38 = vector.load %arg4[%c0_27, %c0_28] : memref<1x256xf32, #tpu.memory_space<vmem>>, vector<1x256xf32>
        %cst_29 = arith.constant 0.000000e+00 : f32
        %39 = vector.broadcast %cst_29 : f32 to vector<1x256xf32>
        %40 = arith.maximumf %38, %39 : vector<1x256xf32>
        %cst_30 = arith.constant 5.600000e+01 : f32
        %41 = vector.broadcast %cst_30 : f32 to vector<1x256xf32>
        %42 = arith.mulf %41, %40 : vector<1x256xf32>
        %43 = arith.subf %36, %42 : vector<1x256xf32>
        %44 = arith.mulf %40, %40 : vector<1x256xf32>
        %cst_31 = arith.constant 5.600000e+01 : f32
        %45 = vector.broadcast %cst_31 : f32 to vector<1x256xf32>
        %46 = arith.mulf %45, %44 : vector<1x256xf32>
        %47 = arith.subf %37, %46 : vector<1x256xf32>
        %cst_32 = arith.constant 5.000000e-03 : f32
        %48 = vector.broadcast %cst_32 : f32 to vector<1x256xf32>
        %49 = arith.mulf %43, %48 : vector<1x256xf32>
        %cst_33 = arith.constant 5.000000e-03 : f32
        %50 = vector.broadcast %cst_33 : f32 to vector<1x256xf32>
        %51 = arith.mulf %47, %50 : vector<1x256xf32>
        %52 = arith.mulf %49, %49 : vector<1x256xf32>
        %53 = arith.subf %51, %52 : vector<1x256xf32>
        %cst_34 = arith.constant 0.000000e+00 : f32
        %54 = vector.broadcast %cst_34 : f32 to vector<1x256xf32>
        %55 = arith.maximumf %53, %54 : vector<1x256xf32>
        %c0_35 = arith.constant 0 : index
        %c0_36 = arith.constant 0 : index
        %56 = vector.load %arg5[%c0_35, %c0_36] : memref<1x256xf32, #tpu.memory_space<vmem>>, vector<1x256xf32>
        %cst_37 = arith.constant 9.99999974E-6 : f32
        %57 = vector.broadcast %cst_37 : f32 to vector<1x256xf32>
        %58 = arith.addf %55, %57 : vector<1x256xf32>
        %59 = math.rsqrt %58 : vector<1x256xf32>
        %60 = arith.mulf %56, %59 : vector<1x256xf32>
        %c0_38 = arith.constant 0 : index
        %c0_39 = arith.constant 0 : index
        %61 = vector.load %arg6[%c0_38, %c0_39] : memref<1x256xf32, #tpu.memory_space<vmem>>, vector<1x256xf32>
        %62 = arith.mulf %49, %60 : vector<1x256xf32>
        %63 = arith.subf %61, %62 : vector<1x256xf32>
        %c0_40 = arith.constant 0 : index
        %c0_41 = arith.constant 0 : index
        %64 = vector.load %arg7[%c0_40, %c0_41] : memref<1x256xf32, #tpu.memory_space<vmem>>, vector<1x256xf32>
        %65 = arith.mulf %64, %60 : vector<1x256xf32>
        %c0_42 = arith.constant 0 : index
        %c0_43 = arith.constant 0 : index
        %66 = vector.load %arg14[%c0_42, %c0_43] : memref<1x256xf32, #tpu.memory_space<vmem>>, vector<1x256xf32>
        tpu.vector_store %arg14[%c0_42, %c0_43], %65 {strides = array<i32>} : memref<1x256xf32, #tpu.memory_space<vmem>>, vector<1x256xf32>,
        %c0_44 = arith.constant 0 : index
        %c0_45 = arith.constant 0 : index
        %67 = vector.load %arg7[%c0_44, %c0_45] : memref<1x256xf32, #tpu.memory_space<vmem>>, vector<1x256xf32>
        %68 = arith.mulf %67, %63 : vector<1x256xf32>
        %cst_46 = arith.constant dense<0.000000e+00> : vector<1xf32>
        %69 = vector.multi_reduction <add>, %68, %cst_46 [1] : vector<1x256xf32> to vector<1xf32>
        %70 = vector.shape_cast %69 : vector<1xf32> to vector<1x1xf32>
        %c0_47 = arith.constant 0 : index
        %c0_48 = arith.constant 0 : index
        %71 = vector.load %arg8[%c0_47, %c0_48] : memref<1x1xf32, #tpu.memory_space<vmem>>, vector<1x1xf32>
        %72 = arith.addf %70, %71 : vector<1x1xf32>
        %c0_49 = arith.constant 0 : index
        %c0_50 = arith.constant 0 : index
        %73 = vector.load %arg15[%c0_49, %c0_50] : memref<1x1xf32, #tpu.memory_space<vmem>>, vector<1x1xf32>
        tpu.vector_store %arg15[%c0_49, %c0_50], %72 {strides = array<i32>} : memref<1x1xf32, #tpu.memory_space<vmem>>, vector<1x1xf32>,
      } else {
      }
    } else {
    }
    %c1_i32 = arith.constant 1 : i32
    %3 = arith.cmpi eq, %arg0, %c1_i32 : i32
    %4 = arith.extui %3 : i1 to i32
    %c0_i32_1 = arith.constant 0 : i32
    %5 = arith.cmpi ne, %4, %c0_i32_1 : i32
    scf.if %5 {
      %c0_i32_2 = arith.constant 0 : i32
      %6 = arith.cmpi eq, %arg1, %c0_i32_2 : i32
      %7 = arith.extui %6 : i1 to i32
      %c0_i32_3 = arith.constant 0 : i32
      %8 = arith.cmpi ne, %7, %c0_i32_3 : i32
      scf.if %8 {
        %cst_20 = arith.constant 0.000000e+00 : f32
        %37 = vector.broadcast %cst_20 : f32 to vector<1x128xf32>
        %c0_21 = arith.constant 0 : index
        %c0_22 = arith.constant 0 : index
        %38 = vector.load %arg16[%c0_21, %c0_22] : memref<1x128xf32, #tpu.memory_space<vmem>>, vector<1x128xf32>
        tpu.vector_store %arg16[%c0_21, %c0_22], %37 {strides = array<i32>} : memref<1x128xf32, #tpu.memory_space<vmem>>, vector<1x128xf32>,
      } else {
      }
      %c128_i32 = arith.constant 128 : i32
      %9 = arith.muli %arg1, %c128_i32 : i32
      %10 = tpu.assume_multiple %9, 128 : i32
      %11 = arith.index_cast %10 : i32 to index
      %c0 = arith.constant 0 : index
      %12 = vector.load %arg17[%11, %c0] : memref<256x256xbf16, #tpu.memory_space<vmem>>, vector<128x256xbf16>
      %c0_4 = arith.constant 0 : index
      %c0_5 = arith.constant 0 : index
      %13 = vector.load %arg14[%c0_4, %c0_5] : memref<1x256xf32, #tpu.memory_space<vmem>>, vector<1x256xf32>
      %14 = arith.truncf %13 : vector<1x256xf32> to vector<1x256xbf16>
      %cst = arith.constant dense<0.000000e+00> : vector<1x128xf32>
      %15 = tpu.matmul %14, %12, %cst {dimension_numbers = #tpu.dot_dimension_numbers<[1], [1], [0], [0], [0, 0, 1, 0], [], []>} : vector<1x256xbf16>, vector<128x256xbf16>, vector<1x128xf32> -> vector<1x128xf32>
      %c0_6 = arith.constant 0 : index
      %c0_7 = arith.constant 0 : index
      %16 = vector.load %arg15[%c0_6, %c0_7] : memref<1x1xf32, #tpu.memory_space<vmem>>, vector<1x1xf32>
      %17 = vector.broadcast %16 : vector<1x1xf32> to vector<1x128xf32>
      %18 = arith.addf %15, %17 : vector<1x128xf32>
      %c0_8 = arith.constant 0 : index
      %c0_9 = arith.constant 0 : index
      %19 = vector.load %arg10[%c0_8, %c0_9] : memref<1x128xf32, #tpu.memory_space<vmem>>, vector<1x128xf32>
      tpu.vector_store %arg10[%c0_8, %c0_9], %18 {strides = array<i32>} : memref<1x128xf32, #tpu.memory_space<vmem>>, vector<1x128xf32>,
      %c0_10 = arith.constant 0 : index
      %c0_11 = arith.constant 0 : index
      %20 = vector.load %arg9[%c0_10, %c0_11] : memref<1x128xf32, #tpu.memory_space<vmem>>, vector<1x128xf32>
      %21 = arith.subf %18, %20 : vector<1x128xf32>
      %c128_i32_12 = arith.constant 128 : i32
      %22 = arith.muli %arg1, %c128_i32_12 : i32
      %23 = tpu.iota {dimensions = array<i32: 1>} : vector<1x128xi32>
      %24 = vector.broadcast %22 : i32 to vector<1x128xi32>
      %25 = arith.addi %24, %23 : vector<1x128xi32>
      %c200_i32 = arith.constant 200 : i32
      %26 = vector.broadcast %c200_i32 : i32 to vector<1x128xi32>
      %27 = arith.cmpi slt, %25, %26 : vector<1x128xi32>
      %cst_13 = arith.constant 0.000000e+00 : f32
      %28 = vector.broadcast %cst_13 : f32 to vector<1x128xf32>
      %29 = arith.select %27, %21, %28 : vector<1x128xi1>, vector<1x128xf32>
      %c0_14 = arith.constant 0 : index
      %c0_15 = arith.constant 0 : index
      %30 = vector.load %arg16[%c0_14, %c0_15] : memref<1x128xf32, #tpu.memory_space<vmem>>, vector<1x128xf32>
      %31 = arith.mulf %29, %29 : vector<1x128xf32>
      %32 = arith.addf %30, %31 : vector<1x128xf32>
      %c0_16 = arith.constant 0 : index
      %c0_17 = arith.constant 0 : index
      %33 = vector.load %arg16[%c0_16, %c0_17] : memref<1x128xf32, #tpu.memory_space<vmem>>, vector<1x128xf32>
      tpu.vector_store %arg16[%c0_16, %c0_17], %32 {strides = array<i32>} : memref<1x128xf32, #tpu.memory_space<vmem>>, vector<1x128xf32>,
      %c1_i32_18 = arith.constant 1 : i32
      %34 = arith.cmpi eq, %arg1, %c1_i32_18 : i32
      %35 = arith.extui %34 : i1 to i32
      %c0_i32_19 = arith.constant 0 : i32
      %36 = arith.cmpi ne, %35, %c0_i32_19 : i32
      scf.if %36 {
        %c0_20 = arith.constant 0 : index
        %c0_21 = arith.constant 0 : index
        %37 = vector.load %arg16[%c0_20, %c0_21] : memref<1x128xf32, #tpu.memory_space<vmem>>, vector<1x128xf32>
        %cst_22 = arith.constant dense<0.000000e+00> : vector<1xf32>
        %38 = vector.multi_reduction <add>, %37, %cst_22 [1] : vector<1x128xf32> to vector<1xf32>
        %39 = vector.shape_cast %38 : vector<1xf32> to vector<1x1xf32>
        %cst_23 = arith.constant 5.000000e-03 : f32
        %40 = vector.broadcast %cst_23 : f32 to vector<1x1xf32>
        %41 = arith.mulf %39, %40 : vector<1x1xf32>
        %c0_24 = arith.constant 0 : index
        %c0_25 = arith.constant 0 : index
        %42 = vector.load %arg11[%c0_24, %c0_25] : memref<1x1xf32, #tpu.memory_space<vmem>>, vector<1x1xf32>
        tpu.vector_store %arg11[%c0_24, %c0_25], %41 {strides = array<i32>} : memref<1x1xf32, #tpu.memory_space<vmem>>, vector<1x1xf32>,
      } else {
      }
    } else {
    }
    return
  }
  func.func @transform_0(%arg0: i32, %arg1: i32) -> (i32, i32) {
    %c1_i32 = arith.constant 1 : i32
    %0 = arith.subi %c1_i32, %arg0 : i32
    %1 = arith.muli %arg1, %0 : i32
    %c1_i32_0 = arith.constant 1 : i32
    %2 = arith.muli %arg0, %c1_i32_0 : i32
    %3 = arith.addi %1, %2 : i32
    %c0_i32 = arith.constant 0 : i32
    %c0_i32_1 = arith.constant 0 : i32
    return %3, %c0_i32 : i32, i32
  }
  func.func @transform_1(%arg0: i32, %arg1: i32) -> (i32, i32) {
    %c0_i32 = arith.constant 0 : i32
    %c0_i32_0 = arith.constant 0 : i32
    %c0_i32_1 = arith.constant 0 : i32
    return %c0_i32, %c0_i32_0 : i32, i32
  }
  func.func @transform_2(%arg0: i32, %arg1: i32) -> (i32, i32) {
    %c0_i32 = arith.constant 0 : i32
    %c0_i32_0 = arith.constant 0 : i32
    %c0_i32_1 = arith.constant 0 : i32
    return %c0_i32, %c0_i32_0 : i32, i32
  }
  func.func @transform_3(%arg0: i32, %arg1: i32) -> (i32, i32) {
    %c0_i32 = arith.constant 0 : i32
    %c0_i32_0 = arith.constant 0 : i32
    %c0_i32_1 = arith.constant 0 : i32
    return %c0_i32, %c0_i32_0 : i32, i32
  }
  func.func @transform_4(%arg0: i32, %arg1: i32) -> (i32, i32) {
    %c0_i32 = arith.constant 0 : i32
    %c0_i32_0 = arith.constant 0 : i32
    %c0_i32_1 = arith.constant 0 : i32
    return %c0_i32, %c0_i32_0 : i32, i32
  }
  func.func @transform_5(%arg0: i32, %arg1: i32) -> (i32, i32) {
    %c0_i32 = arith.constant 0 : i32
    %c0_i32_0 = arith.constant 0 : i32
    %c0_i32_1 = arith.constant 0 : i32
    return %c0_i32, %c0_i32_0 : i32, i32
  }
  func.func @transform_6(%arg0: i32, %arg1: i32) -> (i32, i32) {
    %c0_i32 = arith.constant 0 : i32
    %c0_i32_0 = arith.constant 0 : i32
    %c0_i32_1 = arith.constant 0 : i32
    return %c0_i32, %c0_i32_0 : i32, i32
  }
  func.func @transform_7(%arg0: i32, %arg1: i32) -> (i32, i32) {
    %0 = arith.muli %arg1, %arg0 : i32
    %c0_i32 = arith.constant 0 : i32
    %c0_i32_0 = arith.constant 0 : i32
    return %c0_i32, %0 : i32, i32
  }
  func.func @transform_8(%arg0: i32, %arg1: i32) -> (i32, i32) {
    %0 = arith.muli %arg1, %arg0 : i32
    %c0_i32 = arith.constant 0 : i32
    %c0_i32_0 = arith.constant 0 : i32
    return %c0_i32, %0 : i32, i32
  }
  func.func @transform_9(%arg0: i32, %arg1: i32) -> (i32, i32) {
    %c0_i32 = arith.constant 0 : i32
    %c0_i32_0 = arith.constant 0 : i32
    %c0_i32_1 = arith.constant 0 : i32
    return %c0_i32, %c0_i32_0 : i32, i32
  }
}

</mosaic_0001>

<llo_original>
// kernel: tpu_custom_call.1
$region0: #{tpu_custom_call.1}
  #allocation0 [shape = 'u32[]', space=smem, size = 0x4, offset = 0x4, fixed_abs, tag = 'smem constant byte address 0x4 - core index']
  #allocation1 [shape = 'u32[72,128]{1,0:T(1,128)}', space=vmem, size = 0x9000, scoped, tag = 'internal scratch']
  #allocation2 [shape = 'f32[1,256]{1,0:T(1,128)}', space=vmem, size = 0x400, scoped, tag = 'scratch operand']
  #allocation3 [shape = 'f32[1,256]{1,0:T(1,128)}', space=vmem, size = 0x400, scoped, tag = 'scratch operand']
  #allocation4 [shape = 'f32[1,256]{1,0:T(1,128)}', space=vmem, size = 0x400, scoped, tag = 'scratch operand']
  #allocation5 [shape = 'f32[1,1]{1,0:T(1,128)}', space=vmem, size = 0x200, scoped, tag = 'scratch operand']
  #allocation6 [shape = 'f32[1,128]{1,0:T(1,128)}', space=vmem, size = 0x200, scoped, tag = 'scratch operand']
  #allocation7 [shape = 'bf16[256,256]{1,0:T(8,128)(2,1)}', space=vmem, size = 0x20000, scoped, tag = 'scratch operand']
  #allocation8 [shape = 'f32[1,1]{1,0:T(1,128)S(1)}', space=vmem, size = 0x200, scoped, tag = 'scoped memory for tpu_custom_call.1']
  %s0 = inlined_call_operand.vmem [shape: bf16[256,32], index: 0, kind: input, shape index: {}]
  %s1 = inlined_call_operand.vmem [shape: bf16[32,256], index: 1, kind: input, shape index: {}]
  %s2 = inlined_call_operand.vmem [shape: f32[1,256], index: 2, kind: input, shape index: {}]
  %s3 = inlined_call_operand.vmem [shape: f32[1,256], index: 3, kind: input, shape index: {}]
  %s4 = inlined_call_operand.vmem [shape: f32[1,256], index: 4, kind: input, shape index: {}]
  %s5 = inlined_call_operand.vmem [shape: f32[1,256], index: 5, kind: input, shape index: {}]
  %s6 = inlined_call_operand.<no memory space> [shape: f32[1,1], index: 6, kind: input, shape index: {}]
  %s7 = inlined_call_operand.vmem [shape: f32[1,256], index: 7, kind: input, shape index: {}]
  %s8 = inlined_call_operand.hbm [shape: f32[1,256], index: 8, kind: output, shape index: {0}]
  %s9 = inlined_call_operand.hbm [shape: f32[1,1], index: 9, kind: output, shape index: {1}]
  %10 = xla_tuple %s8, %s9
  %s11 = sld [smem:[#allocation0]]
  $region97: #{tpu_custom_call.1} parent=0
    _
  %s13 = ssub.s32 1, %s11
  %s14 = scalar_select 0, %s13, %s11
  %v15 = vstv %s6
  %16 = vst [vmem:[#allocation8] sm:$0x1] %v15
  $region1: #{tpu_custom_call.1} parent=0
    #allocation9 [shape = 'u8[1024]{0}', space=vmem, size = 0x400, scoped, tag = 'output window, operand 0']
    #allocation10 [shape = 's32[2]{0}', space=sflag, size = 0x8, scoped, tag = 'scoped memory for tpu_custom_call.1']
    #allocation11 [shape = 'u8[512]{0}', space=vmem, size = 0x400, scoped, tag = 'output window, operand 1, single buffered']
    #allocation12 [shape = 's32[1]{0}', space=sflag, size = 0x4, scoped, tag = 'scoped memory for tpu_custom_call.1']
    %17 = vsyncpa [#allocation10], 0
    %s18 = scalar_lea.sflag [#allocation10], 1
    %19 = vsyncpa %s18, 0
    %20 = vsyncpa [#allocation12], 0
    loop: start=0, step=1, limit=6
    $region2: #{tpu_custom_call.1} parent=1 // loop_pre_header
      _
    $region3: #{tpu_custom_call.1} parent=1 // loop_header
      %s22 = sphi 0, %s26
      %p23 = scmp.ge.s32.totalorder %s22, 6
      %s29 = sphi 0, %s41
      %s30 = sphi 0, %s37
      %s31 = sphi 0, %s29
      %s32 = sphi 0, %s30
      %s33 = sphi 0, %s31
      %s34 = sphi 0, %s32
      %s50 = sphi 0, %s52
      %s53 = sphi 0, %s50
      %s54 = sphi 0, %s53
      %s70 = sphi 0, %s54
      %s74 = sphi 0, %s74
      %s76 = sphi 0, %s74
      %s77 = sphi 0, %s76
      %s91 = sphi 0, %s77
      %s95 = sphi 0, %s95
      %s97 = sphi 0, %s95
      %s98 = sphi 0, %s97
      %s112 = sphi 0, %s98
      %s116 = sphi 0, %s116
      %s118 = sphi 0, %s116
      %s119 = sphi 0, %s118
      %s133 = sphi 0, %s119
      %s137 = sphi 0, %s137
      %s139 = sphi 0, %s137
      %s140 = sphi 0, %s139
      %s154 = sphi 0, %s140
      %s158 = sphi 0, %s158
      %s160 = sphi 0, %s158
      %s161 = sphi 0, %s160
      %s175 = sphi 0, %s161
      %s179 = sphi 0, %s179
      %s181 = sphi 0, %s179
      %s182 = sphi 0, %s181
      %s196 = sphi 0, %s182
      %s204 = sphi 0, %s206
      %s207 = sphi 0, %s204
      %s208 = sphi 0, %s207
      %s224 = sphi 0, %s208
      %s232 = sphi 0, %s234
      %s235 = sphi 0, %s232
      %s236 = sphi 0, %s235
      %s252 = sphi 0, %s236
      %s256 = sphi 0, %s256
      %s258 = sphi 0, %s256
      %s259 = sphi 0, %s258
      %s273 = sphi 0, %s259
    $region4: #{tpu_custom_call.1} parent=1 // loop_header_branch
      %25 = sbr.rel (%p23) target = $region8
    $region5: #{tpu_custom_call.1} parent=1 // loop_body
      %s27 = ssub.s32 %s22, 1
      %s28 = ssub.s32 %s22, 2
      %s35 = sadd.s32 1, %s30
      %p36 = scmp.ge.s32.totalorder %s35, 2
      %s37 = scalar_select %p36, 0, %s35
      %s38 = sadd.s32 1, %s29
      %s39 = scalar_select %p36, %s38, %s29
      %p40 = scmp.ge.s32.totalorder %s39, 2
      %s41 = scalar_select %p40, 0, %s39
      %s42 = ssub.s32 1, %s29
      %s43 = smul.u32 %s30, %s42
      %s44 = sadd.s32 %s43, %s29
      %s45 = ssub.s32 1, %s41
      %s46 = smul.u32 %s37, %s45
      %s47 = sadd.s32 %s46, %s41
      %s48 = ssub.s32 %s44, %s47
      %p49 = scmp.eq.s32.totalorder %s48, 0
      %s51 = sadd.s32 %s50, 1
      %s52 = scalar_select %p49, %s50, %s51
      %p55 = pneg %p49
      %p56 = scmp.eq.s32.totalorder %s22, 3
      %p57 = por %p55, %p56
      %p58 = scmp.ne.s32.totalorder %s50, %s53
      %p59 = scmp.eq.s32.totalorder %s22, 0
      %p60 = por %p58, %p59
      %p61 = scmp.ne.s32.totalorder %s50, %s53
      %p62 = scmp.eq.s32.totalorder %s27, 3
      %p63 = por %p61, %p62
      %p64 = scmp.ne.s32.totalorder %s53, %s54
      %p65 = scmp.eq.s32.totalorder %s27, 0
      %p66 = por %p64, %p65
      %p67 = scmp.ne.s32.totalorder %s53, %s54
      %p68 = scmp.eq.s32.totalorder %s28, 3
      %p69 = por %p67, %p68
      %p71 = scmp.ne.s32.totalorder %s54, %s70
      %p72 = scmp.eq.s32.totalorder %s28, 0
      %p73 = por %p71, %p72
      %s75 = sadd.s32 %s74, 1
      %p78 = scmp.eq.s32.totalorder %s22, 3
      %p79 = scmp.ne.s32.totalorder %s74, %s76
      %p80 = scmp.eq.s32.totalorder %s22, 0
      %p81 = por %p79, %p80
      %p82 = scmp.ne.s32.totalorder %s74, %s76
      %p83 = scmp.eq.s32.totalorder %s27, 3
      %p84 = por %p82, %p83
      %p85 = scmp.ne.s32.totalorder %s76, %s77
      %p86 = scmp.eq.s32.totalorder %s27, 0
      %p87 = por %p85, %p86
      %p88 = scmp.ne.s32.totalorder %s76, %s77
      %p89 = scmp.eq.s32.totalorder %s28, 3
      %p90 = por %p88, %p89
      %p92 = scmp.ne.s32.totalorder %s77, %s91
      %p93 = scmp.eq.s32.totalorder %s28, 0
      %p94 = por %p92, %p93
      %s96 = sadd.s32 %s95, 1
      %p99 = scmp.eq.s32.totalorder %s22, 3
      %p100 = scmp.ne.s32.totalorder %s95, %s97
      %p101 = scmp.eq.s32.totalorder %s22, 0
      %p102 = por %p100, %p101
      %p103 = scmp.ne.s32.totalorder %s95, %s97
      %p104 = scmp.eq.s32.totalorder %s27, 3
      %p105 = por %p103, %p104
      %p106 = scmp.ne.s32.totalorder %s97, %s98
      %p107 = scmp.eq.s32.totalorder %s27, 0
      %p108 = por %p106, %p107
      %p109 = scmp.ne.s32.totalorder %s97, %s98
      %p110 = scmp.eq.s32.totalorder %s28, 3
      %p111 = por %p109, %p110
      %p113 = scmp.ne.s32.totalorder %s98, %s112
      %p114 = scmp.eq.s32.totalorder %s28, 0
      %p115 = por %p113, %p114
      %s117 = sadd.s32 %s116, 1
      %p120 = scmp.eq.s32.totalorder %s22, 3
      %p121 = scmp.ne.s32.totalorder %s116, %s118
      %p122 = scmp.eq.s32.totalorder %s22, 0
      %p123 = por %p121, %p122
      %p124 = scmp.ne.s32.totalorder %s116, %s118
      %p125 = scmp.eq.s32.totalorder %s27, 3
      %p126 = por %p124, %p125
      %p127 = scmp.ne.s32.totalorder %s118, %s119
      %p128 = scmp.eq.s32.totalorder %s27, 0
      %p129 = por %p127, %p128
      %p130 = scmp.ne.s32.totalorder %s118, %s119
      %p131 = scmp.eq.s32.totalorder %s28, 3
      %p132 = por %p130, %p131
      %p134 = scmp.ne.s32.totalorder %s119, %s133
      %p135 = scmp.eq.s32.totalorder %s28, 0
      %p136 = por %p134, %p135
      %s138 = sadd.s32 %s137, 1
      %p141 = scmp.eq.s32.totalorder %s22, 3
      %p142 = scmp.ne.s32.totalorder %s137, %s139
      %p143 = scmp.eq.s32.totalorder %s22, 0
      %p144 = por %p142, %p143
      %p145 = scmp.ne.s32.totalorder %s137, %s139
      %p146 = scmp.eq.s32.totalorder %s27, 3
      %p147 = por %p145, %p146
      %p148 = scmp.ne.s32.totalorder %s139, %s140
      %p149 = scmp.eq.s32.totalorder %s27, 0
      %p150 = por %p148, %p149
      %p151 = scmp.ne.s32.totalorder %s139, %s140
      %p152 = scmp.eq.s32.totalorder %s28, 3
      %p153 = por %p151, %p152
      %p155 = scmp.ne.s32.totalorder %s140, %s154
      %p156 = scmp.eq.s32.totalorder %s28, 0
      %p157 = por %p155, %p156
      %s159 = sadd.s32 %s158, 1
      %p162 = scmp.eq.s32.totalorder %s22, 3
      %p163 = scmp.ne.s32.totalorder %s158, %s160
      %p164 = scmp.eq.s32.totalorder %s22, 0
      %p165 = por %p163, %p164
      %p166 = scmp.ne.s32.totalorder %s158, %s160
      %p167 = scmp.eq.s32.totalorder %s27, 3
      %p168 = por %p166, %p167
      %p169 = scmp.ne.s32.totalorder %s160, %s161
      %p170 = scmp.eq.s32.totalorder %s27, 0
      %p171 = por %p169, %p170
      %p172 = scmp.ne.s32.totalorder %s160, %s161
      %p173 = scmp.eq.s32.totalorder %s28, 3
      %p174 = por %p172, %p173
      %p176 = scmp.ne.s32.totalorder %s161, %s175
      %p177 = scmp.eq.s32.totalorder %s28, 0
      %p178 = por %p176, %p177
      %s180 = sadd.s32 %s179, 1
      %p183 = scmp.eq.s32.totalorder %s22, 3
      %p184 = scmp.ne.s32.totalorder %s179, %s181
      %p185 = scmp.eq.s32.totalorder %s22, 0
      %p186 = por %p184, %p185
      %p187 = scmp.ne.s32.totalorder %s179, %s181
      %p188 = scmp.eq.s32.totalorder %s27, 3
      %p189 = por %p187, %p188
      %p190 = scmp.ne.s32.totalorder %s181, %s182
      %p191 = scmp.eq.s32.totalorder %s27, 0
      %p192 = por %p190, %p191
      %p193 = scmp.ne.s32.totalorder %s181, %s182
      %p194 = scmp.eq.s32.totalorder %s28, 3
      %p195 = por %p193, %p194
      %p197 = scmp.ne.s32.totalorder %s182, %s196
      %p198 = scmp.eq.s32.totalorder %s28, 0
      %p199 = por %p197, %p198
      %s200 = smul.u32 %s30, %s29
      %s201 = smul.u32 %s37, %s41
      %s202 = ssub.s32 %s200, %s201
      %p203 = scmp.eq.s32.totalorder %s202, 0
      %s205 = sadd.s32 %s204, 1
      %s206 = scalar_select %p203, %s204, %s205
      %p209 = pneg %p203
      %p210 = scmp.eq.s32.totalorder %s22, 3
      %p211 = por %p209, %p210
      %p212 = scmp.ne.s32.totalorder %s204, %s207
      %p213 = scmp.eq.s32.totalorder %s22, 0
      %p214 = por %p212, %p213
      %p215 = scmp.ne.s32.totalorder %s204, %s207
      %p216 = scmp.eq.s32.totalorder %s27, 3
      %p217 = por %p215, %p216
      %p218 = scmp.ne.s32.totalorder %s207, %s208
      %p219 = scmp.eq.s32.totalorder %s27, 0
      %p220 = por %p218, %p219
      %p221 = scmp.ne.s32.totalorder %s207, %s208
      %p222 = scmp.eq.s32.totalorder %s28, 3
      %p223 = por %p221, %p222
      %p225 = scmp.ne.s32.totalorder %s208, %s224
      %p226 = scmp.eq.s32.totalorder %s28, 0
      %p227 = por %p225, %p226
      %s228 = smul.u32 %s30, %s29
      %s229 = smul.u32 %s37, %s41
      %s230 = ssub.s32 %s228, %s229
      %p231 = scmp.eq.s32.totalorder %s230, 0
      %s233 = sadd.s32 %s232, 1
      %s234 = scalar_select %p231, %s232, %s233
      %p237 = pneg %p231
      %p238 = scmp.eq.s32.totalorder %s22, 3
      %p239 = por %p237, %p238
      %p240 = scmp.ne.s32.totalorder %s232, %s235
      %p241 = scmp.eq.s32.totalorder %s22, 0
      %p242 = por %p240, %p241
      %p243 = scmp.ne.s32.totalorder %s232, %s235
      %p244 = scmp.eq.s32.totalorder %s27, 3
      %p245 = por %p243, %p244
      %p246 = scmp.ne.s32.totalorder %s235, %s236
      %p247 = scmp.eq.s32.totalorder %s27, 0
      %p248 = por %p246, %p247
      %p249 = scmp.ne.s32.totalorder %s235, %s236
      %p250 = scmp.eq.s32.totalorder %s28, 3
      %p251 = por %p249, %p250
      %p253 = scmp.ne.s32.totalorder %s236, %s252
      %p254 = scmp.eq.s32.totalorder %s28, 0
      %p255 = por %p253, %p254
      %s257 = sadd.s32 %s256, 1
      %p260 = scmp.eq.s32.totalorder %s22, 3
      %p261 = scmp.ne.s32.totalorder %s256, %s258
      %p262 = scmp.eq.s32.totalorder %s22, 0
      %p263 = por %p261, %p262
      %p264 = scmp.ne.s32.totalorder %s256, %s258
      %p265 = scmp.eq.s32.totalorder %s27, 3
      %p266 = por %p264, %p265
      %p267 = scmp.ne.s32.totalorder %s258, %s259
      %p268 = scmp.eq.s32.totalorder %s27, 0
      %p269 = por %p267, %p268
      %p270 = scmp.ne.s32.totalorder %s258, %s259
      %p271 = scmp.eq.s32.totalorder %s28, 3
      %p272 = por %p270, %p271
      %p274 = scmp.ne.s32.totalorder %s259, %s273
      %p275 = scmp.eq.s32.totalorder %s28, 0
      %p276 = por %p274, %p275
      %p277 = scmp.le.s32.totalorder 1, %s22
      %p278 = scmp.lt.s32.totalorder %s22, 5
      %p279 = pnand %p277, %p278
      %p280 = pneg %p279
      // Predicated region
      $region9: #{tpu_custom_call.1} parent=5 // pred_check
        _
      $region10: #{tpu_custom_call.1} parent=5 // pred_check_branch
        %282 = sbr.rel (%p279) target = $region12
      $region11: #{tpu_custom_call.1} parent=5 // pred_region
        %s283 = ssub.s32 %s22, 1
        // Predicated region
        $region13: #{tpu_custom_call.1} parent=11 // pred_check
          %p284 = pneg %p87
        $region14: #{tpu_custom_call.1} parent=11 // pred_check_branch
          %286 = sbr.rel (%p284) target = $region16
        $region15: #{tpu_custom_call.1} parent=11 // pred_region
          _
        $region16: #{tpu_custom_call.1} parent=11 // pred_fallthru
          _
        // Predicated region
        $region17: #{tpu_custom_call.1} parent=11 // pred_check
          %p287 = pneg %p108
        $region18: #{tpu_custom_call.1} parent=11 // pred_check_branch
          %289 = sbr.rel (%p287) target = $region20
        $region19: #{tpu_custom_call.1} parent=11 // pred_region
          _
        $region20: #{tpu_custom_call.1} parent=11 // pred_fallthru
          _
        // Predicated region
        $region21: #{tpu_custom_call.1} parent=11 // pred_check
          %p290 = pneg %p129
        $region22: #{tpu_custom_call.1} parent=11 // pred_check_branch
          %292 = sbr.rel (%p290) target = $region24
        $region23: #{tpu_custom_call.1} parent=11 // pred_region
          _
        $region24: #{tpu_custom_call.1} parent=11 // pred_fallthru
          _
        // Predicated region
        $region25: #{tpu_custom_call.1} parent=11 // pred_check
          %p293 = pneg %p150
        $region26: #{tpu_custom_call.1} parent=11 // pred_check_branch
          %295 = sbr.rel (%p293) target = $region28
        $region27: #{tpu_custom_call.1} parent=11 // pred_region
          _
        $region28: #{tpu_custom_call.1} parent=11 // pred_fallthru
          _
        // Predicated region
        $region29: #{tpu_custom_call.1} parent=11 // pred_check
          %p296 = pneg %p171
        $region30: #{tpu_custom_call.1} parent=11 // pred_check_branch
          %298 = sbr.rel (%p296) target = $region32
        $region31: #{tpu_custom_call.1} parent=11 // pred_region
          _
        $region32: #{tpu_custom_call.1} parent=11 // pred_fallthru
          _
        // Predicated region
        $region33: #{tpu_custom_call.1} parent=11 // pred_check
          %p299 = pneg %p192
        $region34: #{tpu_custom_call.1} parent=11 // pred_check_branch
          %301 = sbr.rel (%p299) target = $region36
        $region35: #{tpu_custom_call.1} parent=11 // pred_region
          _
        $region36: #{tpu_custom_call.1} parent=11 // pred_fallthru
          _
      $region12: #{tpu_custom_call.1} parent=5 // pred_fallthru
        _
      %p302 = scmp.lt.s32.totalorder %s22, 4
      // Predicated region
      $region37: #{tpu_custom_call.1} parent=5 // pred_check
        %p303 = pneg %p302
      $region38: #{tpu_custom_call.1} parent=5 // pred_check_branch
        %305 = sbr.rel (%p303) target = $region40
      $region39: #{tpu_custom_call.1} parent=5 // pred_region
        // Predicated region
        $region41: #{tpu_custom_call.1} parent=39 // pred_check
          %p306 = pneg %p60
        $region42: #{tpu_custom_call.1} parent=39 // pred_check_branch
          %308 = sbr.rel (%p306) target = $region44
        $region43: #{tpu_custom_call.1} parent=39 // pred_region
          %s309 = ssub.s32 1, %s29
          %s310 = smul.u32 %s30, %s309
          %s311 = sadd.s32 %s310, %s29
          %s312 = smul.u32 16, %s311
          %p313 = scmp.lt.s32.totalorder %s312, 31
          %s314 = scalar_select %p313, %s312, 31
          %s315 = smul.addr %s314, 4
          %s316 = scalar_lea.vmem %s0, %s315
          %s317 = ssub.s32 1, %s29
          %s318 = smul.u32 %s30, %s317
          %s319 = sadd.s32 %s318, %s29
          %s320 = smul.u32 16, %s319
        $region44: #{tpu_custom_call.1} parent=39 // pred_fallthru
          _
        // Predicated region
        $region45: #{tpu_custom_call.1} parent=39 // pred_check
          %p321 = pneg %p214
        $region46: #{tpu_custom_call.1} parent=39 // pred_check_branch
          %323 = sbr.rel (%p321) target = $region48
        $region47: #{tpu_custom_call.1} parent=39 // pred_region
          %s324 = smul.u32 %s30, %s29
          %p325 = scmp.lt.s32.totalorder %s324, 1
          %s326 = scalar_select %p325, %s324, 1
          %s327 = scalar_lea.vmem %s7, %s326
          %s328 = smul.u32 %s30, %s29
        $region48: #{tpu_custom_call.1} parent=39 // pred_fallthru
          _
      $region40: #{tpu_custom_call.1} parent=5 // pred_fallthru
        _
      %p329 = scmp.le.s32.totalorder 1, %s22
      %p330 = scmp.lt.s32.totalorder %s22, 5
      %p331 = pnand %p329, %p330
      %p332 = pneg %p331
      // Predicated region
      $region49: #{tpu_custom_call.1} parent=5 // pred_check
        _
      $region50: #{tpu_custom_call.1} parent=5 // pred_check_branch
        %334 = sbr.rel (%p331) target = $region52
      $region51: #{tpu_custom_call.1} parent=5 // pred_region
        %s335 = ssub.s32 %s22, 1
        %s336 = ssub.s32 1, %s31
        %s337 = smul.u32 %s32, %s336
        %s338 = sadd.s32 %s337, %s31
        %s339 = smul.u32 16, %s338
        %p340 = scmp.lt.s32.totalorder %s339, 31
        %s341 = scalar_select %p340, %s339, 31
        %s342 = smul.addr %s341, 4
        %s343 = scalar_lea.vmem %s0, %s342
        %p344 = pneg %p66
        %p345 = pneg %p63
        %p346 = pneg %p87
        %p347 = pneg %p84
        %p348 = pneg %p108
        %p349 = pneg %p105
        %p350 = pneg %p129
        %p351 = pneg %p126
        %p352 = pneg %p150
        %p353 = pneg %p147
        %p354 = pneg %p171
        %p355 = pneg %p168
        %p356 = pneg %p192
        %p357 = pneg %p189
        %s358 = smul.u32 %s32, %s31
        %p359 = scmp.lt.s32.totalorder %s358, 1
        %s360 = scalar_select %p359, %s358, 1
        %s361 = scalar_lea.vmem %s7, %s360
        %p362 = pneg %p220
        %p363 = pneg %p217
        %p364 = pneg %p248
        %p365 = pneg %p245
        %s366 = sand.u32 %s235, 1
        %s367 = scalar_lea.sflag [#allocation10], %s366
        %s368 = sand.u32 %s235, 1
        %s369 = scalar_lea.vmem [#allocation9], %s368
        %p370 = pneg %p269
        %p371 = pneg %p266
        %s372 = ssub.s32 1, %s31
        %s373 = smul.u32 %s32, %s372
        %s374 = sadd.s32 %s373, %s31
        %s375 = smul.u32 16, %s374
        %p376 = scmp.lt.s32.totalorder %s375, 31
        %s377 = scalar_select %p376, %s375, 31
        %s378 = smul.addr %s377, 4
        %s379 = scalar_lea.vmem %s0, %s378
        %s380 = ssub.s32 1, %s31
        %s381 = smul.u32 %s32, %s380
        %s382 = sadd.s32 %s381, %s31
        %s383 = smul.u32 16, %s382
        %s384 = smul.u32 %s32, %s31
        %p385 = scmp.lt.s32.totalorder %s384, 1
        %s386 = scalar_select %p385, %s384, 1
        %s387 = scalar_lea.vmem %s7, %s386
        %s388 = smul.u32 %s32, %s31
        %s389 = smul.u32 %s32, %s31
        %p391 = scmp.eq.s32.totalorder %s31, 0
        // Predicated region
        $region53: #{tpu_custom_call.1} parent=51 // pred_check
          %p392 = pneg %p391
        $region54: #{tpu_custom_call.1} parent=51 // pred_check_branch
          %394 = sbr.rel (%p392) target = $region56
        $region55: #{tpu_custom_call.1} parent=51 // pred_region
          %p395 = scmp.eq.s32.totalorder %s32, 0
          // Predicated region
          $region57: #{tpu_custom_call.1} parent=55 // pred_check
            %p396 = pneg %p395
          $region58: #{tpu_custom_call.1} parent=55 // pred_check_branch
            %398 = sbr.rel (%p396) target = $region60
          $region59: #{tpu_custom_call.1} parent=55 // pred_region
            %v399 = vlaneseq
            %vm400 = vcmp.ge.s32.totalorder %v399, 0
            %vm401 = vcmp.lt.s32.totalorder %v399, 256
            %vm402 = vmand %vm400, %vm401
            %403 = vst.msk [vmem:[#allocation2] sm:$0x3] %vm402, 0.0
            %404 = vst.msk [vmem:[#allocation3] sm:$0x3] %vm402, 0.0
            %405 = vst [vmem:[%s369] sm:$0x1] 0.0
            %vm406 = vcmask 0
            %407 = vst.msk [vmem:[#allocation11] sm:$0x1] %vm406, 0.0
          $region60: #{tpu_custom_call.1} parent=55 // pred_fallthru
            _
          %v408 = vld [vmem:[%s379] sm:$0xf]
          %v409 = vld [vmem:[%s379 + $0x4] sm:$0xf]
          %v410 = vld [vmem:[%s379 + $0x8] sm:$0xf]
          %v411 = vld [vmem:[%s379 + $0xc] sm:$0xf]
          %v412 = vld [vmem:[%s379 + $0x10] sm:$0xf]
          %v413 = vld [vmem:[%s379 + $0x14] sm:$0xf]
          %v414 = vld [vmem:[%s379 + $0x18] sm:$0xf]
          %v415 = vld [vmem:[%s379 + $0x1c] sm:$0xf]
          %v416 = vld [vmem:[%s379 + $0x20] sm:$0xf]
          %v417 = vld [vmem:[%s379 + $0x24] sm:$0xf]
          %v418 = vld [vmem:[%s379 + $0x28] sm:$0xf]
          %v419 = vld [vmem:[%s379 + $0x2c] sm:$0xf]
          %v420 = vld [vmem:[%s379 + $0x30] sm:$0xf]
          %v421 = vld [vmem:[%s379 + $0x34] sm:$0xf]
          %v422 = vld [vmem:[%s379 + $0x38] sm:$0xf]
          %v423 = vld [vmem:[%s379 + $0x3c] sm:$0xf]
          %v424 = vld [vmem:[%s1] sm:$0xff]
          %v425 = vld [vmem:[%s1 + $0x8] sm:$0xff]
          %v426 = vld [vmem:[%s1 + $0x10] sm:$0xff]
          %v427 = vld [vmem:[%s1 + $0x18] sm:$0xff]
          %v428 = vld [vmem:[%s2] sm:$0x3]
          %v430 = vperm.slane %v428, 0
          %v431 = vperm.slane %v428, 1
          %v450 = vunpack.c.l.b16 %v408
          %v451 = vunpack.c.l.b16 %v409
          %v452 = vunpack.c.l.b16 %v410
          %v453 = vunpack.c.l.b16 %v411
          %v454 = vunpack.c.l.b16 %v412
          %v455 = vunpack.c.l.b16 %v413
          %v456 = vunpack.c.l.b16 %v414
          %v457 = vunpack.c.l.b16 %v415
          %v458 = vunpack.c.l.b16 %v416
          %v459 = vunpack.c.l.b16 %v417
          %v460 = vunpack.c.l.b16 %v418
          %v461 = vunpack.c.l.b16 %v419
          %v462 = vunpack.c.l.b16 %v420
          %v463 = vunpack.c.l.b16 %v421
          %v464 = vunpack.c.l.b16 %v422
          %v465 = vunpack.c.l.b16 %v423
          %v466 = vpack.c.b16 %v451, %v450
          %v467 = vpack.c.b16 %v453, %v452
          %v468 = vpack.c.b16 %v455, %v454
          %v469 = vpack.c.b16 %v457, %v456
          %v470 = vpack.c.b16 %v459, %v458
          %v471 = vpack.c.b16 %v461, %v460
          %v472 = vpack.c.b16 %v463, %v462
          %v473 = vpack.c.b16 %v465, %v464
          %v478 = vunpack.c.l.b16 %v424
          %v479 = vunpack.c.h.b16 %v424
          %v480 = vunpack.c.l.b16 %v425
          %v481 = vunpack.c.h.b16 %v425
          %v482 = vunpack.c.l.b16 %v426
          %v483 = vunpack.c.h.b16 %v426
          %v484 = vunpack.c.l.b16 %v427
          %v485 = vunpack.c.h.b16 %v427
          %v486 = vpack.c.b16 %v480, %v478
          %v487 = vpack.c.b16 %v481, %v479
          %v488 = vpack.c.b16 %v484, %v482
          %v489 = vpack.c.b16 %v485, %v483
          %vm494 = vcmask 261120
          %v496 = vsel %vm494, %v466, 0
          %v499 = vsel %vm494, %v467, 0
          %v502 = vsel %vm494, %v468, 0
          %v505 = vsel %vm494, %v469, 0
          %v508 = vsel %vm494, %v470, 0
          %v511 = vsel %vm494, %v471, 0
          %v514 = vsel %vm494, %v472, 0
          %v517 = vsel %vm494, %v473, 0
          %519 = vmatpush.bf16.msra.mxu0 0
          %520 = vmatpush.bf16.msra.mxu0 0
          %521 = vmatpush.bf16.msra.mxu0 0
          %522 = vmatpush.bf16.msra.mxu0 0
          %523 = vmatpush.bf16.msra.mxu0 0
          %524 = vmatpush.bf16.msra.mxu0 0
          %525 = vmatpush.bf16.msra.mxu0 %v488
          %526 = vmatpush.bf16.msra.mxu0 %v486
          %527 = vmatmul.bf16.gmra.mxu0 %v496
          %v528 = vpop.f32.mrf.mxu0
          %v529 = vadd.f32 %v430, %v528
          %v530 = vpop.f32.mrf.mxu0
          %v531 = vadd.f32 %v430, %v530
          %532 = vmatmul.bf16.gmra.mxu0 %v499
          %v533 = vpop.f32.mrf.mxu0
          %v534 = vadd.f32 %v430, %v533
          %v535 = vpop.f32.mrf.mxu0
          %v536 = vadd.f32 %v430, %v535
          %537 = vmatmul.bf16.gmra.mxu0 %v502
          %v538 = vpop.f32.mrf.mxu0
          %v539 = vadd.f32 %v430, %v538
          %v540 = vpop.f32.mrf.mxu0
          %v541 = vadd.f32 %v430, %v540
          %542 = vmatmul.bf16.gmra.mxu0 %v505
          %v543 = vpop.f32.mrf.mxu0
          %v544 = vadd.f32 %v430, %v543
          %v545 = vpop.f32.mrf.mxu0
          %v546 = vadd.f32 %v430, %v545
          %547 = vmatmul.bf16.gmra.mxu0 %v508
          %v548 = vpop.f32.mrf.mxu0
          %v549 = vadd.f32 %v430, %v548
          %v550 = vpop.f32.mrf.mxu0
          %v551 = vadd.f32 %v430, %v550
          %552 = vmatmul.bf16.gmra.mxu0 %v511
          %v553 = vpop.f32.mrf.mxu0
          %v554 = vadd.f32 %v430, %v553
          %v555 = vpop.f32.mrf.mxu0
          %v556 = vadd.f32 %v430, %v555
          %557 = vmatmul.bf16.gmra.mxu0 %v514
          %v558 = vpop.f32.mrf.mxu0
          %v559 = vadd.f32 %v430, %v558
          %v560 = vpop.f32.mrf.mxu0
          %v561 = vadd.f32 %v430, %v560
          %562 = vmatmul.bf16.gmra.mxu0 %v517
          %v563 = vpop.f32.mrf.mxu0
          %v564 = vadd.f32 %v430, %v563
          %v565 = vpop.f32.mrf.mxu0
          %v566 = vadd.f32 %v430, %v565
          %567 = vdwg.mxu0
          %568 = vmatpush.bf16.msra.mxu0 0
          %569 = vmatpush.bf16.msra.mxu0 0
          %570 = vmatpush.bf16.msra.mxu0 0
          %571 = vmatpush.bf16.msra.mxu0 0
          %572 = vmatpush.bf16.msra.mxu0 0
          %573 = vmatpush.bf16.msra.mxu0 0
          %574 = vmatpush.bf16.msra.mxu0 %v489
          %575 = vmatpush.bf16.msra.mxu0 %v487
          %576 = vmatmul.bf16.gmra.mxu0 %v496
          %v577 = vpop.f32.mrf.mxu0
          %v578 = vadd.f32 %v431, %v577
          %v579 = vpop.f32.mrf.mxu0
          %v580 = vadd.f32 %v431, %v579
          %581 = vmatmul.bf16.gmra.mxu0 %v499
          %v582 = vpop.f32.mrf.mxu0
          %v583 = vadd.f32 %v431, %v582
          %v584 = vpop.f32.mrf.mxu0
          %v585 = vadd.f32 %v431, %v584
          %586 = vmatmul.bf16.gmra.mxu0 %v502
          %v587 = vpop.f32.mrf.mxu0
          %v588 = vadd.f32 %v431, %v587
          %v589 = vpop.f32.mrf.mxu0
          %v590 = vadd.f32 %v431, %v589
          %591 = vmatmul.bf16.gmra.mxu0 %v505
          %v592 = vpop.f32.mrf.mxu0
          %v593 = vadd.f32 %v431, %v592
          %v594 = vpop.f32.mrf.mxu0
          %v595 = vadd.f32 %v431, %v594
          %596 = vmatmul.bf16.gmra.mxu0 %v508
          %v597 = vpop.f32.mrf.mxu0
          %v598 = vadd.f32 %v431, %v597
          %v599 = vpop.f32.mrf.mxu0
          %v600 = vadd.f32 %v431, %v599
          %601 = vmatmul.bf16.gmra.mxu0 %v511
          %v602 = vpop.f32.mrf.mxu0
          %v603 = vadd.f32 %v431, %v602
          %v604 = vpop.f32.mrf.mxu0
          %v605 = vadd.f32 %v431, %v604
          %606 = vmatmul.bf16.gmra.mxu0 %v514
          %v607 = vpop.f32.mrf.mxu0
          %v608 = vadd.f32 %v431, %v607
          %v609 = vpop.f32.mrf.mxu0
          %v610 = vadd.f32 %v431, %v609
          %611 = vmatmul.bf16.gmra.mxu0 %v517
          %v612 = vpop.f32.mrf.mxu0
          %v613 = vadd.f32 %v431, %v612
          %v614 = vpop.f32.mrf.mxu0
          %v615 = vadd.f32 %v431, %v614
          %616 = vdwg.mxu0
          %v617 = vmax.f32 %v529, 0.0
          %v618 = vmax.f32 %v578, 0.0
          %v619 = vmax.f32 %v531, 0.0
          %v620 = vmax.f32 %v580, 0.0
          %v621 = vmax.f32 %v534, 0.0
          %v622 = vmax.f32 %v583, 0.0
          %v623 = vmax.f32 %v536, 0.0
          %v624 = vmax.f32 %v585, 0.0
          %v625 = vmax.f32 %v539, 0.0
          %v626 = vmax.f32 %v588, 0.0
          %v627 = vmax.f32 %v541, 0.0
          %v628 = vmax.f32 %v590, 0.0
          %v629 = vmax.f32 %v544, 0.0
          %v630 = vmax.f32 %v593, 0.0
          %v631 = vmax.f32 %v546, 0.0
          %v632 = vmax.f32 %v595, 0.0
          %v633 = vmax.f32 %v549, 0.0
          %v634 = vmax.f32 %v598, 0.0
          %v635 = vmax.f32 %v551, 0.0
          %v636 = vmax.f32 %v600, 0.0
          %v637 = vmax.f32 %v554, 0.0
          %v638 = vmax.f32 %v603, 0.0
          %v639 = vmax.f32 %v556, 0.0
          %v640 = vmax.f32 %v605, 0.0
          %v641 = vmax.f32 %v559, 0.0
          %v642 = vmax.f32 %v608, 0.0
          %v643 = vmax.f32 %v561, 0.0
          %v644 = vmax.f32 %v610, 0.0
          %v645 = vmax.f32 %v564, 0.0
          %v646 = vmax.f32 %v613, 0.0
          %v647 = vmax.f32 %v566, 0.0
          %v648 = vmax.f32 %v615, 0.0
          %v649 = vld [vmem:[#allocation2] sm:$0x3]
          %v650 = vadd.f32 %v617, %v619
          %v651 = vadd.f32 %v650, %v621
          %v652 = vadd.f32 %v651, %v623
          %v653 = vadd.f32 %v652, %v625
          %v654 = vadd.f32 %v653, %v627
          %v655 = vadd.f32 %v654, %v629
          %v656 = vadd.f32 %v655, %v631
          %v657 = vadd.f32 %v656, %v633
          %v658 = vadd.f32 %v657, %v635
          %v659 = vadd.f32 %v658, %v637
          %v660 = vadd.f32 %v659, %v639
          %v661 = vadd.f32 %v660, %v641
          %v662 = vadd.f32 %v661, %v643
          %v663 = vadd.f32 %v662, %v645
          %v664 = vadd.f32 %v663, %v647
          %v665 = vrot.slane %v664, 4
          %v666 = vadd.f32 %v664, %v665
          %v667 = vrot.slane %v666, 2
          %v668 = vadd.f32 %v666, %v667
          %v669 = vrot.slane %v668, 1
          %v670 = vadd.f32 %v668, %v669
          %v671 = vadd.f32 %v618, %v620
          %v672 = vadd.f32 %v671, %v622
          %v673 = vadd.f32 %v672, %v624
          %v674 = vadd.f32 %v673, %v626
          %v675 = vadd.f32 %v674, %v628
          %v676 = vadd.f32 %v675, %v630
          %v677 = vadd.f32 %v676, %v632
          %v678 = vadd.f32 %v677, %v634
          %v679 = vadd.f32 %v678, %v636
          %v680 = vadd.f32 %v679, %v638
          %v681 = vadd.f32 %v680, %v640
          %v682 = vadd.f32 %v681, %v642
          %v683 = vadd.f32 %v682, %v644
          %v684 = vadd.f32 %v683, %v646
          %v685 = vadd.f32 %v684, %v648
          %v686 = vrot.slane %v685, 4
          %v687 = vadd.f32 %v685, %v686
          %v688 = vrot.slane %v687, 2
          %v689 = vadd.f32 %v687, %v688
          %v690 = vrot.slane %v689, 1
          %v691 = vadd.f32 %v689, %v690
          %v694 = vrot.slane %v691, 7
          %vm695 = vcmask 1040384
          %v696 = vsel %vm695, %v670, %v694
          %v698 = vadd.f32 %v649, %v696
          %v699 = vlaneseq
          %vm700 = vcmp.ge.s32.totalorder %v699, 0
          %vm701 = vcmp.lt.s32.totalorder %v699, 256
          %vm702 = vmand %vm700, %vm701
          %703 = vst.msk [vmem:[#allocation2] sm:$0x3] %vm702, %v698
          %v704 = vld [vmem:[#allocation3] sm:$0x3]
          %v705 = vmul.f32 %v617, %v617
          %v706 = vmul.f32 %v618, %v618
          %v707 = vmul.f32 %v619, %v619
          %v708 = vmul.f32 %v620, %v620
          %v709 = vmul.f32 %v621, %v621
          %v710 = vmul.f32 %v622, %v622
          %v711 = vmul.f32 %v623, %v623
          %v712 = vmul.f32 %v624, %v624
          %v713 = vmul.f32 %v625, %v625
          %v714 = vmul.f32 %v626, %v626
          %v715 = vmul.f32 %v627, %v627
          %v716 = vmul.f32 %v628, %v628
          %v717 = vmul.f32 %v629, %v629
          %v718 = vmul.f32 %v630, %v630
          %v719 = vmul.f32 %v631, %v631
          %v720 = vmul.f32 %v632, %v632
          %v721 = vmul.f32 %v633, %v633
          %v722 = vmul.f32 %v634, %v634
          %v723 = vmul.f32 %v635, %v635
          %v724 = vmul.f32 %v636, %v636
          %v725 = vmul.f32 %v637, %v637
          %v726 = vmul.f32 %v638, %v638
          %v727 = vmul.f32 %v639, %v639
          %v728 = vmul.f32 %v640, %v640
          %v729 = vmul.f32 %v641, %v641
          %v730 = vmul.f32 %v642, %v642
          %v731 = vmul.f32 %v643, %v643
          %v732 = vmul.f32 %v644, %v644
          %v733 = vmul.f32 %v645, %v645
          %v734 = vmul.f32 %v646, %v646
          %v735 = vmul.f32 %v647, %v647
          %v736 = vmul.f32 %v648, %v648
          %v737 = vadd.f32 %v705, %v707
          %v738 = vadd.f32 %v737, %v709
          %v739 = vadd.f32 %v738, %v711
          %v740 = vadd.f32 %v739, %v713
          %v741 = vadd.f32 %v740, %v715
          %v742 = vadd.f32 %v741, %v717
          %v743 = vadd.f32 %v742, %v719
          %v744 = vadd.f32 %v743, %v721
          %v745 = vadd.f32 %v744, %v723
          %v746 = vadd.f32 %v745, %v725
          %v747 = vadd.f32 %v746, %v727
          %v748 = vadd.f32 %v747, %v729
          %v749 = vadd.f32 %v748, %v731
          %v750 = vadd.f32 %v749, %v733
          %v751 = vadd.f32 %v750, %v735
          %v752 = vrot.slane %v751, 4
          %v753 = vadd.f32 %v751, %v752
          %v754 = vrot.slane %v753, 2
          %v755 = vadd.f32 %v753, %v754
          %v756 = vrot.slane %v755, 1
          %v757 = vadd.f32 %v755, %v756
          %v758 = vadd.f32 %v706, %v708
          %v759 = vadd.f32 %v758, %v710
          %v760 = vadd.f32 %v759, %v712
          %v761 = vadd.f32 %v760, %v714
          %v762 = vadd.f32 %v761, %v716
          %v763 = vadd.f32 %v762, %v718
          %v764 = vadd.f32 %v763, %v720
          %v765 = vadd.f32 %v764, %v722
          %v766 = vadd.f32 %v765, %v724
          %v767 = vadd.f32 %v766, %v726
          %v768 = vadd.f32 %v767, %v728
          %v769 = vadd.f32 %v768, %v730
          %v770 = vadd.f32 %v769, %v732
          %v771 = vadd.f32 %v770, %v734
          %v772 = vadd.f32 %v771, %v736
          %v773 = vrot.slane %v772, 4
          %v774 = vadd.f32 %v772, %v773
          %v775 = vrot.slane %v774, 2
          %v776 = vadd.f32 %v774, %v775
          %v777 = vrot.slane %v776, 1
          %v778 = vadd.f32 %v776, %v777
          %v781 = vrot.slane %v778, 7
          %v782 = vsel %vm695, %v757, %v781
          %v784 = vadd.f32 %v704, %v782
          %785 = vst.msk [vmem:[#allocation3] sm:$0x3] %vm702, %v784
          %s786 = smul.u32 %s32, 128
          %v787 = vpack.c.bf16 %v618, %v617
          %v788 = vpack.c.bf16 %v620, %v619
          %v789 = vpack.c.bf16 %v622, %v621
          %v790 = vpack.c.bf16 %v624, %v623
          %v791 = vpack.c.bf16 %v626, %v625
          %v792 = vpack.c.bf16 %v628, %v627
          %v793 = vpack.c.bf16 %v630, %v629
          %v794 = vpack.c.bf16 %v632, %v631
          %v795 = vpack.c.bf16 %v634, %v633
          %v796 = vpack.c.bf16 %v636, %v635
          %v797 = vpack.c.bf16 %v638, %v637
          %v798 = vpack.c.bf16 %v640, %v639
          %v799 = vpack.c.bf16 %v642, %v641
          %v800 = vpack.c.bf16 %v644, %v643
          %v801 = vpack.c.bf16 %v646, %v645
          %v802 = vpack.c.bf16 %v648, %v647
          %s803 = sshra.s32 %s786, 3
          %s804 = sand.u32 %s786, 7
          %s805 = smul.u32 %s803, 2
          %s806 = smul.addr %s805, 4
          %s807 = scalar_lea.vmem [#allocation7], %s806
          %808 = vst [vmem:[%s807] sm:$0xff] %v787
          %809 = vst [vmem:[%s807 + $0x8] sm:$0xff] %v788
          %810 = vst [vmem:[%s807 + $0x10] sm:$0xff] %v789
          %811 = vst [vmem:[%s807 + $0x18] sm:$0xff] %v790
          %812 = vst [vmem:[%s807 + $0x20] sm:$0xff] %v791
          %813 = vst [vmem:[%s807 + $0x28] sm:$0xff] %v792
          %814 = vst [vmem:[%s807 + $0x30] sm:$0xff] %v793
          %815 = vst [vmem:[%s807 + $0x38] sm:$0xff] %v794
          %816 = vst [vmem:[%s807 + $0x40] sm:$0xff] %v795
          %817 = vst [vmem:[%s807 + $0x48] sm:$0xff] %v796
          %818 = vst [vmem:[%s807 + $0x50] sm:$0xff] %v797
          %819 = vst [vmem:[%s807 + $0x58] sm:$0xff] %v798
          %820 = vst [vmem:[%s807 + $0x60] sm:$0xff] %v799
          %821 = vst [vmem:[%s807 + $0x68] sm:$0xff] %v800
          %822 = vst [vmem:[%s807 + $0x70] sm:$0xff] %v801
          %823 = vst [vmem:[%s807 + $0x78] sm:$0xff] %v802
          %p824 = scmp.eq.s32.totalorder %s32, 1
          // Predicated region
          $region61: #{tpu_custom_call.1} parent=55 // pred_check
            %p825 = pneg %p824
          $region62: #{tpu_custom_call.1} parent=55 // pred_check_branch
            %827 = sbr.rel (%p825) target = $region64
          $region63: #{tpu_custom_call.1} parent=55 // pred_region
            %v828 = vld [vmem:[#allocation2] sm:$0x3]
            %v829 = vld [vmem:[#allocation3] sm:$0x3]
            %v830 = vld [vmem:[%s2] sm:$0x3]
            %v831 = vmax.f32 %v830, 0.0
            %v832 = vmul.f32 %v831, 56.0
            %v833 = vsub.f32 %v828, %v832
            %v834 = vmul.f32 %v831, %v831
            %v835 = vmul.f32 %v834, 56.0
            %v836 = vsub.f32 %v829, %v835
            %v837 = vmul.f32 %v833, 0.005
            %v838 = vmul.f32 %v836, 0.005
            %v839 = vmul.f32 %v837, %v837
            %v840 = vsub.f32 %v838, %v839
            %v841 = vmax.f32 %v840, 0.0
            %v842 = vld [vmem:[%s3] sm:$0x3]
            %v843 = vadd.f32 %v841, 1e-05
            %v844 = vrsqrt.pop %v843
            %v845 = vmul.f32 %v844, %v843
            %v846 = vmul.f32 %v845, %v844
            %v847 = vmul.f32 0.5, %v846
            %v848 = vsub.f32 1.5, %v847
            %v849 = vmul.f32 %v844, %v848
            %vm850 = vweird.f32 %v843
            %vm851 = vweird.f32 %v844
            %vm852 = vmor %vm850, %vm851
            %v853 = vsel %vm852, %v844, %v849
            %v854 = vmul.f32 %v842, %v853
            %v855 = vld [vmem:[%s4] sm:$0x3]
            %v856 = vmul.f32 %v837, %v854
            %v857 = vsub.f32 %v855, %v856
            %v858 = vld [vmem:[%s5] sm:$0x3]
            %v859 = vmul.f32 %v858, %v854
            %860 = vst.msk [vmem:[#allocation4] sm:$0x3] %vm702, %v859
            %v861 = vld [vmem:[%s5] sm:$0x3]
            %v862 = vmul.f32 %v861, %v857
            %v864 = vperm.slane %v862, 0
            %v865 = vperm.slane %v862, 1
            %v868 = vsel %vm695, %v864, 0.0
            %v869 = vsel %vm695, %v865, 0.0
            %v870 = vadd.f32 %v868, %v869
            %871 = vadd.xlane.f32.xlu0 %v870
            %v872 = vpop.xlane.xlu0 %871
            %v873 = vld [vmem:[#allocation8] sm:$0x1]
            %v874 = vadd.f32 %v872, %v873
            %vm875 = vcmask 0
            %876 = vst.msk [vmem:[#allocation5] sm:$0x1] %vm875, %v874
          $region64: #{tpu_custom_call.1} parent=55 // pred_fallthru
            _
        $region56: #{tpu_custom_call.1} parent=51 // pred_fallthru
          _
        %p877 = scmp.eq.s32.totalorder %s31, 1
        // Predicated region
        $region65: #{tpu_custom_call.1} parent=51 // pred_check
          %p878 = pneg %p877
        $region66: #{tpu_custom_call.1} parent=51 // pred_check_branch
          %880 = sbr.rel (%p878) target = $region68
        $region67: #{tpu_custom_call.1} parent=51 // pred_region
          %p881 = scmp.eq.s32.totalorder %s32, 0
          // Predicated region
          $region69: #{tpu_custom_call.1} parent=67 // pred_check
            %p882 = pneg %p881
          $region70: #{tpu_custom_call.1} parent=67 // pred_check_branch
            %884 = sbr.rel (%p882) target = $region72
          $region71: #{tpu_custom_call.1} parent=67 // pred_region
            %885 = vst [vmem:[#allocation6] sm:$0x1] 0.0
          $region72: #{tpu_custom_call.1} parent=67 // pred_fallthru
            _
          %s886 = smul.u32 %s32, 128
          %s887 = sshra.s32 %s886, 3
          %s888 = sand.u32 %s886, 7
          %s889 = smul.u32 %s887, 2
          %s890 = smul.addr %s889, 4
          %s891 = scalar_lea.vmem [#allocation7], %s890
          %v892 = vld [vmem:[%s891] sm:$0xff]
          %v893 = vld [vmem:[%s891 + $0x8] sm:$0xff]
          %v894 = vld [vmem:[%s891 + $0x10] sm:$0xff]
          %v895 = vld [vmem:[%s891 + $0x18] sm:$0xff]
          %v896 = vld [vmem:[%s891 + $0x20] sm:$0xff]
          %v897 = vld [vmem:[%s891 + $0x28] sm:$0xff]
          %v898 = vld [vmem:[%s891 + $0x30] sm:$0xff]
          %v899 = vld [vmem:[%s891 + $0x38] sm:$0xff]
          %v900 = vld [vmem:[%s891 + $0x40] sm:$0xff]
          %v901 = vld [vmem:[%s891 + $0x48] sm:$0xff]
          %v902 = vld [vmem:[%s891 + $0x50] sm:$0xff]
          %v903 = vld [vmem:[%s891 + $0x58] sm:$0xff]
          %v904 = vld [vmem:[%s891 + $0x60] sm:$0xff]
          %v905 = vld [vmem:[%s891 + $0x68] sm:$0xff]
          %v906 = vld [vmem:[%s891 + $0x70] sm:$0xff]
          %v907 = vld [vmem:[%s891 + $0x78] sm:$0xff]
          %v908 = vld [vmem:[#allocation4] sm:$0x3]
          %v910 = vperm.slane %v908, 0
          %v911 = vperm.slane %v908, 1
          %v914 = vpack.c.bf16 %v910, %v910
          %v915 = vpack.c.bf16 %v911, %v911
          %v916 = vld [vmem:[#allocation5] sm:$0x1]
          %918 = vset.pattern.permute.xlu0 0
          %919 = vperm.xlu0 %918, %v916
          %v920 = vpop.permute.xlu0 %919
          %v922 = vperm.slane %v920, 0
          %v939 = vunpack.c.l.b16 %v892
          %v940 = vunpack.c.h.b16 %v892
          %v941 = vunpack.c.l.b16 %v893
          %v942 = vunpack.c.h.b16 %v893
          %v943 = vunpack.c.l.b16 %v894
          %v944 = vunpack.c.h.b16 %v894
          %v945 = vunpack.c.l.b16 %v895
          %v946 = vunpack.c.h.b16 %v895
          %v947 = vunpack.c.l.b16 %v896
          %v948 = vunpack.c.h.b16 %v896
          %v949 = vunpack.c.l.b16 %v897
          %v950 = vunpack.c.h.b16 %v897
          %v951 = vunpack.c.l.b16 %v898
          %v952 = vunpack.c.h.b16 %v898
          %v953 = vunpack.c.l.b16 %v899
          %v954 = vunpack.c.h.b16 %v899
          %v955 = vunpack.c.l.b16 %v900
          %v956 = vunpack.c.h.b16 %v900
          %v957 = vunpack.c.l.b16 %v901
          %v958 = vunpack.c.h.b16 %v901
          %v959 = vunpack.c.l.b16 %v902
          %v960 = vunpack.c.h.b16 %v902
          %v961 = vunpack.c.l.b16 %v903
          %v962 = vunpack.c.h.b16 %v903
          %v963 = vunpack.c.l.b16 %v904
          %v964 = vunpack.c.h.b16 %v904
          %v965 = vunpack.c.l.b16 %v905
          %v966 = vunpack.c.h.b16 %v905
          %v967 = vunpack.c.l.b16 %v906
          %v968 = vunpack.c.h.b16 %v906
          %v969 = vunpack.c.l.b16 %v907
          %v970 = vunpack.c.h.b16 %v907
          %v971 = vpack.c.b16 %v941, %v939
          %v972 = vpack.c.b16 %v942, %v940
          %v973 = vpack.c.b16 %v945, %v943
          %v974 = vpack.c.b16 %v946, %v944
          %v975 = vpack.c.b16 %v949, %v947
          %v976 = vpack.c.b16 %v950, %v948
          %v977 = vpack.c.b16 %v953, %v951
          %v978 = vpack.c.b16 %v954, %v952
          %v979 = vpack.c.b16 %v957, %v955
          %v980 = vpack.c.b16 %v958, %v956
          %v981 = vpack.c.b16 %v961, %v959
          %v982 = vpack.c.b16 %v962, %v960
          %v983 = vpack.c.b16 %v965, %v963
          %v984 = vpack.c.b16 %v966, %v964
          %v985 = vpack.c.b16 %v969, %v967
          %v986 = vpack.c.b16 %v970, %v968
          %1003 = vmatpush.bf16.xpose.msra.mxu0 %v985
          %1004 = vmatpush.bf16.xpose.msra.mxu0 %v983
          %1005 = vmatpush.bf16.xpose.msra.mxu0 %v981
          %1006 = vmatpush.bf16.xpose.msra.mxu0 %v979
          %1007 = vmatpush.bf16.xpose.msra.mxu0 %v977
          %1008 = vmatpush.bf16.xpose.msra.mxu0 %v975
          %1009 = vmatpush.bf16.xpose.msra.mxu0 %v973
          %1010 = vmatpush.bf16.xpose.msra.mxu0 %v971
          %1011 = vmatmul.bf16.gmra.mxu0 %v914
          %v1012 = vpop.f32.mrf.mxu0
          %v1013 = vadd.f32 %v922, %v1012
          %v1014 = vpop.f32.mrf.mxu0
          %1015 = vdwg.mxu0
          %1016 = vmatpush.bf16.xpose.msra.mxu0 %v986
          %1017 = vmatpush.bf16.xpose.msra.mxu0 %v984
          %1018 = vmatpush.bf16.xpose.msra.mxu0 %v982
          %1019 = vmatpush.bf16.xpose.msra.mxu0 %v980
          %1020 = vmatpush.bf16.xpose.msra.mxu0 %v978
          %1021 = vmatpush.bf16.xpose.msra.mxu0 %v976
          %1022 = vmatpush.bf16.xpose.msra.mxu0 %v974
          %1023 = vmatpush.bf16.xpose.msra.mxu0 %v972
          %1024 = vmatmul.bf16.gmra.mxu0 %v915
          %v1025 = vpop.f32.mrf.mxu0
          %v1026 = vadd.f32 %v1013, %v1025
          %v1027 = vpop.f32.mrf.mxu0
          %1028 = vdwg.mxu0
          %1029 = vst [vmem:[%s369] sm:$0x1] %v1026
          %v1030 = vld [vmem:[%s387] sm:$0x1]
          %v1031 = vsub.f32 %v1026, %v1030
          %v1032 = vlaneseq
          %v1033 = vand.u32 %v1032, 127
          %v1034 = vstv %s886
          %v1035 = vadd.s32 %v1034, %v1033
          %vm1036 = vcmp.lt.s32.totalorder %v1035, 200
          %v1037 = vsel %vm1036, %v1031, 0.0
          %v1038 = vld [vmem:[#allocation6] sm:$0x1]
          %v1039 = vmul.f32 %v1037, %v1037
          %v1040 = vadd.f32 %v1038, %v1039
          %1041 = vst [vmem:[#allocation6] sm:$0x1] %v1040
          %p1042 = scmp.eq.s32.totalorder %s32, 1
          // Predicated region
          $region73: #{tpu_custom_call.1} parent=67 // pred_check
            %p1043 = pneg %p1042
          $region74: #{tpu_custom_call.1} parent=67 // pred_check_branch
            %1045 = sbr.rel (%p1043) target = $region76
          $region75: #{tpu_custom_call.1} parent=67 // pred_region
            %v1046 = vld [vmem:[#allocation6] sm:$0x1]
            %vm1047 = vcmask 1040384
            %v1048 = vsel %vm1047, %v1046, 0.0
            %1049 = vadd.xlane.f32.xlu0 %v1048
            %v1050 = vpop.xlane.xlu0 %1049
            %v1051 = vmul.f32 %v1050, 0.005
            %vm1052 = vcmask 0
            %1053 = vst.msk [vmem:[#allocation11] sm:$0x1] %vm1052, %v1051
          $region76: #{tpu_custom_call.1} parent=67 // pred_fallthru
            _
        $region68: #{tpu_custom_call.1} parent=51 // pred_fallthru
          _
        %s1054 = sand.u32 %s235, 1
        %s1055 = scalar_lea.sflag [#allocation10], %s1054
        %s1056 = sand.u32 %s235, 1
        %s1057 = scalar_lea.vmem [#allocation9], %s1056
        // Predicated region
        $region77: #{tpu_custom_call.1} parent=51 // pred_check
          %p1058 = pneg %p245
        $region78: #{tpu_custom_call.1} parent=51 // pred_check_branch
          %1060 = sbr.rel (%p1058) target = $region80
        $region79: #{tpu_custom_call.1} parent=51 // pred_region
          %s1061 = smul.u32 %s32, %s31
          %1063 = vsyncadd %s1055, 0
          %s1064 = scalar_lea.hbm %s8, %s1061
          %s1066 = sshll.u32 %s1057, 4
          %s1067 = int_to_ptr.vmem [resolvable:$true] %s1066
          %s1068 = sshll.u32 %s1064, 4
          %s1069 = int_to_ptr.hbm [resolvable:$true] %s1068
          %1071 = dma.vmem_to_hbm [thread:$0]  %s1067, 16, %s1069, %s1055
        $region80: #{tpu_custom_call.1} parent=51 // pred_fallthru
          _
        // Predicated region
        $region81: #{tpu_custom_call.1} parent=51 // pred_check
          %p1072 = pneg %p266
        $region82: #{tpu_custom_call.1} parent=51 // pred_check_branch
          %1074 = sbr.rel (%p1072) target = $region84
        $region83: #{tpu_custom_call.1} parent=51 // pred_region
          %1076 = vsyncadd [#allocation12], 0
          %s1078 = sshll.u32 [#allocation11], 4
          %s1079 = int_to_ptr.vmem [resolvable:$true] %s1078
          %s1080 = sshll.u32 %s9, 4
          %s1081 = int_to_ptr.hbm [resolvable:$true] %s1080
          %1083 = dma.vmem_to_hbm [thread:$0]  %s1079, 16, %s1081, [#allocation12]
        $region84: #{tpu_custom_call.1} parent=51 // pred_fallthru
          _
        // Predicated region
        $region85: #{tpu_custom_call.1} parent=51 // pred_check
          %p1084 = pneg %p266
        $region86: #{tpu_custom_call.1} parent=51 // pred_check_branch
          %1086 = sbr.rel (%p1084) target = $region88
        $region87: #{tpu_custom_call.1} parent=51 // pred_region
          %1088 = dma.done [#allocation12], 16
        $region88: #{tpu_custom_call.1} parent=51 // pred_fallthru
          _
      $region52: #{tpu_custom_call.1} parent=5 // pred_fallthru
        _
      %p1089 = scmp.le.s32.totalorder 2, %s22
      // Predicated region
      $region89: #{tpu_custom_call.1} parent=5 // pred_check
        %p1090 = pneg %p1089
      $region90: #{tpu_custom_call.1} parent=5 // pred_check_branch
        %1092 = sbr.rel (%p1090) target = $region92
      $region91: #{tpu_custom_call.1} parent=5 // pred_region
        %s1093 = ssub.s32 %s22, 2
        // Predicated region
        $region93: #{tpu_custom_call.1} parent=91 // pred_check
          %p1094 = pneg %p251
        $region94: #{tpu_custom_call.1} parent=91 // pred_check_branch
          %1096 = sbr.rel (%p1094) target = $region96
        $region95: #{tpu_custom_call.1} parent=91 // pred_region
          %s1097 = sand.u32 %s236, 1
          %s1098 = scalar_lea.sflag [#allocation10], %s1097
          %s1099 = sand.u32 %s236, 1
          %s1100 = scalar_lea.vmem [#allocation9], %s1099
          %1102 = dma.done %s1098, 16
        $region96: #{tpu_custom_call.1} parent=91 // pred_fallthru
          _
      $region92: #{tpu_custom_call.1} parent=5 // pred_fallthru
        _
    $region6: #{tpu_custom_call.1} parent=1 // loop_footer
      %s26 = sadd.s32 1, %s22
    $region7: #{tpu_custom_call.1} parent=1 // loop_footer_branch
      %21 = sbr.rel target = $region3
    $region8: #{tpu_custom_call.1} parent=1 // loop_exit
      _
    %1103 = vsyncpa [#allocation10], 1
    %s1104 = scalar_lea.sflag [#allocation10], 1
    %1105 = vsyncpa %s1104, 1
    %1106 = vsyncpa [#allocation12], 1

</llo_original>
